<compile_context>
chip_gen: v7x
topology: tpu7x:2x2x1
jax: 0.10.0
libtpu: 0.0.40
codegen_flags: <defaults>
</compile_context>

<pallas_src>
import functools

import numpy as np
import jax
import jax.numpy as jnp
from jax.experimental import pallas as pl


def _mdnrnn_kernel(x_ref, h0_ref, c0_ref,
                   wih_ref, whh_ref, b_ref,
                   wh_ref, bh_ref,
                   mdn_ref, h_out_ref, c_out_ref,
                   *, n_hidden, seq_len, batch, head_pad):
    H, T, B, P = n_hidden, seq_len, batch, head_pad

    # (1) Hoisted input projection: ONE MXU call for all timesteps with the
    #     fused LSTM bias.  Kept as a traced value (a couple of vregs) and
    #     pre-sliced into per-step (B, 4H) blocks BEFORE the recurrence, so
    #     the slicing work is data-independent of the loop state and can be
    #     scheduled off the serial chain.
    xproj = (jnp.dot(x_ref[...], wih_ref[...],
                     preferred_element_type=jnp.float32)
             + b_ref[...])                                  # (T*B, 4H)
    xproj_t = [xproj[t * B:(t + 1) * B, :] for t in range(T)]

    # (2) Serial LSTM recurrence.  Only h @ W_hh remains inside the loop.
    #     T is small and static -> fully unrolled, every slice static.
    #     PyTorch gate order: i, f, g, o.
    whh = whh_ref[...]                                      # (H, 4H), loaded once
    h = h0_ref[...]                                         # (B, H)
    c = c0_ref[...]                                         # (B, H)
    hs = []
    for t in range(T):
        gates = xproj_t[t] + jnp.dot(h, whh,
                                     preferred_element_type=jnp.float32)  # (B, 4H)
        # Two full-width EUP pushes instead of four narrow sliced ones.
        sg = jax.nn.sigmoid(gates)                          # (B, 4H)
        th = jnp.tanh(gates)                                # (B, 4H)
        i_g = sg[:, 0 * H:1 * H]
        f_g = sg[:, 1 * H:2 * H]
        g_g = th[:, 2 * H:3 * H]
        o_g = sg[:, 3 * H:4 * H]
        c = f_g * c + i_g * g_g
        h = o_g * jnp.tanh(c)
        hs.append(h)                                        # no in-loop VMEM stores

    h_out_ref[...] = h
    c_out_ref[...] = c

    # (3) All three MDN heads as ONE fused matmul over every timestep:
    #     (T*B, H) @ (H, 3*P).  Heads were padded to P=128 lanes each in the
    #     wrapper, so every slab boundary below is vreg-aligned.
    h_all = jnp.concatenate(hs, axis=0)                     # (T*B, H), off-chain
    heads = (jnp.dot(h_all, wh_ref[...],
                     preferred_element_type=jnp.float32)
             + bh_ref[...])                                 # (T*B, 3*P)

    # (4) Packed lane-dense output: [pi logits | mu | exp(sigma)].
    #     Both stores are unmasked and lane-aligned; exp() touches only the
    #     sigma slab (no inf from large pi/mu logits, no masked select).
    mdn_ref[:, :2 * P] = heads[:, :2 * P]
    mdn_ref[:, 2 * P:] = jnp.exp(heads[:, 2 * P:])


def mdnrnn_forward(x, h0, c0, params, *, n_hidden, n_gaussians):
    """x: (B, T, In) batch_first; h0, c0: (n_layers=1, B, H).
    Returns ((pi, mu, sigma), (h, c)) with PyTorch shapes."""
    B, T, In = x.shape
    H, G = n_hidden, n_gaussians
    GIn = G * In
    P = ((GIn + 127) // 128) * 128       # per-head lane padding -> unmasked stores

    # Time-major, flattened: row r = t*B + b.
    x_flat = jnp.transpose(x, (1, 0, 2)).reshape(T * B, In)

    def pad_head(a):                     # (., GIn) -> (., P)
        return jnp.pad(a, ((0, 0), (0, P - GIn)))

    # Fuse the three MDN head weights/biases into one (H, 3*P) matmul with
    # each head padded to a 128-lane boundary.
    w_heads = jnp.concatenate([pad_head(params["w_pi_t"]),
                               pad_head(params["w_mu_t"]),
                               pad_head(params["w_sig_t"])], axis=1)   # (H, 3P)
    b_heads = jnp.concatenate([pad_head(params["b_pi"]),
                               pad_head(params["b_mu"]),
                               pad_head(params["b_sig"])], axis=1)     # (1, 3P)

    kernel = functools.partial(_mdnrnn_kernel, n_hidden=H, seq_len=T,
                               batch=B, head_pad=P)

    mdn, h_f, c_f = pl.pallas_call(
        kernel,
        out_shape=(
            jax.ShapeDtypeStruct((T * B, 3 * P), jnp.float32),  # packed heads
            jax.ShapeDtypeStruct((B, H), jnp.float32),          # final h
            jax.ShapeDtypeStruct((B, H), jnp.float32),          # final c
        ),
    )(x_flat, h0[0], c0[0],
      params["w_ih_t"], params["w_hh_t"], params["b"], w_heads, b_heads)

    # Wrapper-side layout plumbing + gaussian-axis softmax (matches PyTorch's
    # .view(-1, T, G, In) then F.softmax(dim=2)).
    def unpack(a):                        # (T*B, GIn) -> (B, T, G, In)
        return jnp.transpose(a.reshape(T, B, G, In), (1, 0, 2, 3))

    pi = jax.nn.softmax(unpack(mdn[:, 0 * P:0 * P + GIn]), axis=2)
    mu = unpack(mdn[:, 1 * P:1 * P + GIn])
    sigma = unpack(mdn[:, 2 * P:2 * P + GIn])   # exp already applied in-kernel
    return (pi, mu, sigma), (h_f[None], c_f[None])


def mdnrnn_reference(x, h0, c0, params, *, n_hidden, n_gaussians):
    """Pure-JAX reference (mirrors the PyTorch forward) for verification."""
    H, G = n_hidden, n_gaussians
    B, T, In = x.shape

    def step(carry, x_t):
        h, c = carry
        gates = x_t @ params["w_ih_t"] + h @ params["w_hh_t"] + params["b"][0]
        i = jax.nn.sigmoid(gates[:, :H])
        f = jax.nn.sigmoid(gates[:, H:2 * H])
        g = jnp.tanh(gates[:, 2 * H:3 * H])
        o = jax.nn.sigmoid(gates[:, 3 * H:])
        c = f * c + i * g
        h = o * jnp.tanh(c)
        return (h, c), h

    (h_f, c_f), ys = jax.lax.scan(step, (h0[0], c0[0]),
                                  jnp.transpose(x, (1, 0, 2)))
    y = jnp.transpose(ys, (1, 0, 2))           # (B, T, H)
    pi = (y @ params["w_pi_t"] + params["b_pi"][0]).reshape(B, T, G, In)
    mu = (y @ params["w_mu_t"] + params["b_mu"][0]).reshape(B, T, G, In)
    sg = (y @ params["w_sig_t"] + params["b_sig"][0]).reshape(B, T, G, In)
    pi = jax.nn.softmax(pi, axis=2)
    return (pi, mu, jnp.exp(sg)), (h_f[None], c_f[None])


if __name__ == "__main__":
    # Small shapes consistent with the module: input_size = z_size + act_size.
    z_size, act_size = 13, 3
    In = z_size + act_size        # 16
    H = 32                        # n_hidden
    G = 5                         # n_gaussians
    B, T = 2, 8

    key = jax.random.PRNGKey(0)
    ks = jax.random.split(key, 10)
    s = 0.1
    params = {
        "w_ih_t": s * jax.random.normal(ks[0], (In, 4 * H), jnp.float32),
        "w_hh_t": s * jax.random.normal(ks[1], (H, 4 * H), jnp.float32),
        "b":      s * jax.random.normal(ks[2], (1, 4 * H), jnp.float32),
        "w_pi_t": s * jax.random.normal(ks[3], (H, G * In), jnp.float32),
        "b_pi":   s * jax.random.normal(ks[4], (1, G * In), jnp.float32),
        "w_mu_t": s * jax.random.normal(ks[5], (H, G * In), jnp.float32),
        "b_mu":   s * jax.random.normal(ks[6], (1, G * In), jnp.float32),
        "w_sig_t": s * jax.random.normal(ks[7], (H, G * In), jnp.float32),
        "b_sig":  s * jax.random.normal(ks[8], (1, G * In), jnp.float32),
    }
    x = jax.random.normal(ks[9], (B, T, In), jnp.float32)
    h0 = jnp.zeros((1, B, H), jnp.float32)   # init_hidden
    c0 = jnp.zeros((1, B, H), jnp.float32)

    (pi, mu, sigma), (h_f, c_f) = mdnrnn_forward(
        x, h0, c0, params, n_hidden=H, n_gaussians=G)
    jax.block_until_ready((pi, mu, sigma, h_f, c_f))

    (pi_r, mu_r, sig_r), (h_r, c_r) = mdnrnn_reference(
        x, h0, c0, params, n_hidden=H, n_gaussians=G)

    np.testing.assert_allclose(np.asarray(pi), np.asarray(pi_r), atol=1e-5, rtol=1e-5)
    np.testing.assert_allclose(np.asarray(mu), np.asarray(mu_r), atol=1e-5, rtol=1e-5)
    np.testing.assert_allclose(np.asarray(sigma), np.asarray(sig_r), atol=1e-5, rtol=1e-5)
    np.testing.assert_allclose(np.asarray(h_f), np.asarray(h_r), atol=1e-5, rtol=1e-5)
    np.testing.assert_allclose(np.asarray(c_f), np.asarray(c_r), atol=1e-5, rtol=1e-5)

    assert pi.shape == (B, T, G, In) and sigma.shape == (B, T, G, In)
    assert h_f.shape == (1, B, H) and c_f.shape == (1, B, H)
    print("KERNEL_OK")
</pallas_src>

<mosaic_0001>
module attributes {stable_mosaic.version = 11 : i64} {
  func.func @_mdnrnn_kernel(%arg0: memref<16x16xf32, #tpu.memory_space<vmem>>, %arg1: memref<2x32xf32, #tpu.memory_space<vmem>>, %arg2: memref<2x32xf32, #tpu.memory_space<vmem>>, %arg3: memref<16x128xf32, #tpu.memory_space<vmem>>, %arg4: memref<32x128xf32, #tpu.memory_space<vmem>>, %arg5: memref<1x128xf32, #tpu.memory_space<vmem>>, %arg6: memref<32x384xf32, #tpu.memory_space<vmem>>, %arg7: memref<1x384xf32, #tpu.memory_space<vmem>>, %arg8: memref<16x384xf32, #tpu.memory_space<vmem>>, %arg9: memref<2x32xf32, #tpu.memory_space<vmem>>, %arg10: memref<2x32xf32, #tpu.memory_space<vmem>>) attributes {dimension_semantics = [], scalar_prefetch = 0 : i64, scratch_operands = 0 : i64, tpu.core_type = #tpu.core_type<tc>} {
    %c0 = arith.constant 0 : index
    %c0_0 = arith.constant 0 : index
    %0 = vector.load %arg0[%c0, %c0_0] : memref<16x16xf32, #tpu.memory_space<vmem>>, vector<16x16xf32>
    %c0_1 = arith.constant 0 : index
    %c0_2 = arith.constant 0 : index
    %1 = vector.load %arg3[%c0_1, %c0_2] : memref<16x128xf32, #tpu.memory_space<vmem>>, vector<16x128xf32>
    %cst = arith.constant dense<0.000000e+00> : vector<16x128xf32>
    %2 = tpu.matmul %0, %1, %cst {dimension_numbers = #tpu.dot_dimension_numbers<[1], [0], [0], [1], [0, 0, 1, 1], [], []>} : vector<16x16xf32>, vector<16x128xf32>, vector<16x128xf32> -> vector<16x128xf32>
    %c0_3 = arith.constant 0 : index
    %c0_4 = arith.constant 0 : index
    %3 = vector.load %arg5[%c0_3, %c0_4] : memref<1x128xf32, #tpu.memory_space<vmem>>, vector<1x128xf32>
    %4 = vector.broadcast %3 : vector<1x128xf32> to vector<16x128xf32>
    %5 = arith.addf %2, %4 : vector<16x128xf32>
    %6 = vector.extract_strided_slice %5 {offsets = [0, 0], sizes = [2, 128], strides = [1, 1]} : vector<16x128xf32> to vector<2x128xf32>
    %7 = vector.extract_strided_slice %5 {offsets = [2, 0], sizes = [2, 128], strides = [1, 1]} : vector<16x128xf32> to vector<2x128xf32>
    %8 = vector.extract_strided_slice %5 {offsets = [4, 0], sizes = [2, 128], strides = [1, 1]} : vector<16x128xf32> to vector<2x128xf32>
    %9 = vector.extract_strided_slice %5 {offsets = [6, 0], sizes = [2, 128], strides = [1, 1]} : vector<16x128xf32> to vector<2x128xf32>
    %10 = vector.extract_strided_slice %5 {offsets = [8, 0], sizes = [2, 128], strides = [1, 1]} : vector<16x128xf32> to vector<2x128xf32>
    %11 = vector.extract_strided_slice %5 {offsets = [10, 0], sizes = [2, 128], strides = [1, 1]} : vector<16x128xf32> to vector<2x128xf32>
    %12 = vector.extract_strided_slice %5 {offsets = [12, 0], sizes = [2, 128], strides = [1, 1]} : vector<16x128xf32> to vector<2x128xf32>
    %13 = vector.extract_strided_slice %5 {offsets = [14, 0], sizes = [2, 128], strides = [1, 1]} : vector<16x128xf32> to vector<2x128xf32>
    %c0_5 = arith.constant 0 : index
    %c0_6 = arith.constant 0 : index
    %14 = vector.load %arg4[%c0_5, %c0_6] : memref<32x128xf32, #tpu.memory_space<vmem>>, vector<32x128xf32>
    %c0_7 = arith.constant 0 : index
    %c0_8 = arith.constant 0 : index
    %15 = vector.load %arg1[%c0_7, %c0_8] : memref<2x32xf32, #tpu.memory_space<vmem>>, vector<2x32xf32>
    %c0_9 = arith.constant 0 : index
    %c0_10 = arith.constant 0 : index
    %16 = vector.load %arg2[%c0_9, %c0_10] : memref<2x32xf32, #tpu.memory_space<vmem>>, vector<2x32xf32>
    %cst_11 = arith.constant dense<0.000000e+00> : vector<2x128xf32>
    %17 = tpu.matmul %15, %14, %cst_11 {dimension_numbers = #tpu.dot_dimension_numbers<[1], [0], [0], [1], [0, 0, 1, 1], [], []>} : vector<2x32xf32>, vector<32x128xf32>, vector<2x128xf32> -> vector<2x128xf32>
    %18 = arith.addf %6, %17 : vector<2x128xf32>
    %19 = arith.negf %18 : vector<2x128xf32>
    %20 = math.exp %19 : vector<2x128xf32>
    %cst_12 = arith.constant 1.000000e+00 : f32
    %21 = vector.broadcast %cst_12 : f32 to vector<2x128xf32>
    %22 = arith.addf %21, %20 : vector<2x128xf32>
    %23 = arith.divf %21, %22 : vector<2x128xf32>
    %24 = math.tanh %18 : vector<2x128xf32>
    %25 = vector.extract_strided_slice %23 {offsets = [0, 0], sizes = [2, 32], strides = [1, 1]} : vector<2x128xf32> to vector<2x32xf32>
    %26 = vector.extract_strided_slice %23 {offsets = [0, 32], sizes = [2, 32], strides = [1, 1]} : vector<2x128xf32> to vector<2x32xf32>
    %27 = vector.extract_strided_slice %24 {offsets = [0, 64], sizes = [2, 32], strides = [1, 1]} : vector<2x128xf32> to vector<2x32xf32>
    %28 = vector.extract_strided_slice %23 {offsets = [0, 96], sizes = [2, 32], strides = [1, 1]} : vector<2x128xf32> to vector<2x32xf32>
    %29 = arith.mulf %26, %16 : vector<2x32xf32>
    %30 = arith.mulf %25, %27 : vector<2x32xf32>
    %31 = arith.addf %29, %30 : vector<2x32xf32>
    %32 = math.tanh %31 : vector<2x32xf32>
    %33 = arith.mulf %28, %32 : vector<2x32xf32>
    %cst_13 = arith.constant dense<0.000000e+00> : vector<2x128xf32>
    %34 = tpu.matmul %33, %14, %cst_13 {dimension_numbers = #tpu.dot_dimension_numbers<[1], [0], [0], [1], [0, 0, 1, 1], [], []>} : vector<2x32xf32>, vector<32x128xf32>, vector<2x128xf32> -> vector<2x128xf32>
    %35 = arith.addf %7, %34 : vector<2x128xf32>
    %36 = arith.negf %35 : vector<2x128xf32>
    %37 = math.exp %36 : vector<2x128xf32>
    %cst_14 = arith.constant 1.000000e+00 : f32
    %38 = vector.broadcast %cst_14 : f32 to vector<2x128xf32>
    %39 = arith.addf %38, %37 : vector<2x128xf32>
    %40 = arith.divf %38, %39 : vector<2x128xf32>
    %41 = math.tanh %35 : vector<2x128xf32>
    %42 = vector.extract_strided_slice %40 {offsets = [0, 0], sizes = [2, 32], strides = [1, 1]} : vector<2x128xf32> to vector<2x32xf32>
    %43 = vector.extract_strided_slice %40 {offsets = [0, 32], sizes = [2, 32], strides = [1, 1]} : vector<2x128xf32> to vector<2x32xf32>
    %44 = vector.extract_strided_slice %41 {offsets = [0, 64], sizes = [2, 32], strides = [1, 1]} : vector<2x128xf32> to vector<2x32xf32>
    %45 = vector.extract_strided_slice %40 {offsets = [0, 96], sizes = [2, 32], strides = [1, 1]} : vector<2x128xf32> to vector<2x32xf32>
    %46 = arith.mulf %43, %31 : vector<2x32xf32>
    %47 = arith.mulf %42, %44 : vector<2x32xf32>
    %48 = arith.addf %46, %47 : vector<2x32xf32>
    %49 = math.tanh %48 : vector<2x32xf32>
    %50 = arith.mulf %45, %49 : vector<2x32xf32>
    %cst_15 = arith.constant dense<0.000000e+00> : vector<2x128xf32>
    %51 = tpu.matmul %50, %14, %cst_15 {dimension_numbers = #tpu.dot_dimension_numbers<[1], [0], [0], [1], [0, 0, 1, 1], [], []>} : vector<2x32xf32>, vector<32x128xf32>, vector<2x128xf32> -> vector<2x128xf32>
    %52 = arith.addf %8, %51 : vector<2x128xf32>
    %53 = arith.negf %52 : vector<2x128xf32>
    %54 = math.exp %53 : vector<2x128xf32>
    %cst_16 = arith.constant 1.000000e+00 : f32
    %55 = vector.broadcast %cst_16 : f32 to vector<2x128xf32>
    %56 = arith.addf %55, %54 : vector<2x128xf32>
    %57 = arith.divf %55, %56 : vector<2x128xf32>
    %58 = math.tanh %52 : vector<2x128xf32>
    %59 = vector.extract_strided_slice %57 {offsets = [0, 0], sizes = [2, 32], strides = [1, 1]} : vector<2x128xf32> to vector<2x32xf32>
    %60 = vector.extract_strided_slice %57 {offsets = [0, 32], sizes = [2, 32], strides = [1, 1]} : vector<2x128xf32> to vector<2x32xf32>
    %61 = vector.extract_strided_slice %58 {offsets = [0, 64], sizes = [2, 32], strides = [1, 1]} : vector<2x128xf32> to vector<2x32xf32>
    %62 = vector.extract_strided_slice %57 {offsets = [0, 96], sizes = [2, 32], strides = [1, 1]} : vector<2x128xf32> to vector<2x32xf32>
    %63 = arith.mulf %60, %48 : vector<2x32xf32>
    %64 = arith.mulf %59, %61 : vector<2x32xf32>
    %65 = arith.addf %63, %64 : vector<2x32xf32>
    %66 = math.tanh %65 : vector<2x32xf32>
    %67 = arith.mulf %62, %66 : vector<2x32xf32>
    %cst_17 = arith.constant dense<0.000000e+00> : vector<2x128xf32>
    %68 = tpu.matmul %67, %14, %cst_17 {dimension_numbers = #tpu.dot_dimension_numbers<[1], [0], [0], [1], [0, 0, 1, 1], [], []>} : vector<2x32xf32>, vector<32x128xf32>, vector<2x128xf32> -> vector<2x128xf32>
    %69 = arith.addf %9, %68 : vector<2x128xf32>
    %70 = arith.negf %69 : vector<2x128xf32>
    %71 = math.exp %70 : vector<2x128xf32>
    %cst_18 = arith.constant 1.000000e+00 : f32
    %72 = vector.broadcast %cst_18 : f32 to vector<2x128xf32>
    %73 = arith.addf %72, %71 : vector<2x128xf32>
    %74 = arith.divf %72, %73 : vector<2x128xf32>
    %75 = math.tanh %69 : vector<2x128xf32>
    %76 = vector.extract_strided_slice %74 {offsets = [0, 0], sizes = [2, 32], strides = [1, 1]} : vector<2x128xf32> to vector<2x32xf32>
    %77 = vector.extract_strided_slice %74 {offsets = [0, 32], sizes = [2, 32], strides = [1, 1]} : vector<2x128xf32> to vector<2x32xf32>
    %78 = vector.extract_strided_slice %75 {offsets = [0, 64], sizes = [2, 32], strides = [1, 1]} : vector<2x128xf32> to vector<2x32xf32>
    %79 = vector.extract_strided_slice %74 {offsets = [0, 96], sizes = [2, 32], strides = [1, 1]} : vector<2x128xf32> to vector<2x32xf32>
    %80 = arith.mulf %77, %65 : vector<2x32xf32>
    %81 = arith.mulf %76, %78 : vector<2x32xf32>
    %82 = arith.addf %80, %81 : vector<2x32xf32>
    %83 = math.tanh %82 : vector<2x32xf32>
    %84 = arith.mulf %79, %83 : vector<2x32xf32>
    %cst_19 = arith.constant dense<0.000000e+00> : vector<2x128xf32>
    %85 = tpu.matmul %84, %14, %cst_19 {dimension_numbers = #tpu.dot_dimension_numbers<[1], [0], [0], [1], [0, 0, 1, 1], [], []>} : vector<2x32xf32>, vector<32x128xf32>, vector<2x128xf32> -> vector<2x128xf32>
    %86 = arith.addf %10, %85 : vector<2x128xf32>
    %87 = arith.negf %86 : vector<2x128xf32>
    %88 = math.exp %87 : vector<2x128xf32>
    %cst_20 = arith.constant 1.000000e+00 : f32
    %89 = vector.broadcast %cst_20 : f32 to vector<2x128xf32>
    %90 = arith.addf %89, %88 : vector<2x128xf32>
    %91 = arith.divf %89, %90 : vector<2x128xf32>
    %92 = math.tanh %86 : vector<2x128xf32>
    %93 = vector.extract_strided_slice %91 {offsets = [0, 0], sizes = [2, 32], strides = [1, 1]} : vector<2x128xf32> to vector<2x32xf32>
    %94 = vector.extract_strided_slice %91 {offsets = [0, 32], sizes = [2, 32], strides = [1, 1]} : vector<2x128xf32> to vector<2x32xf32>
    %95 = vector.extract_strided_slice %92 {offsets = [0, 64], sizes = [2, 32], strides = [1, 1]} : vector<2x128xf32> to vector<2x32xf32>
    %96 = vector.extract_strided_slice %91 {offsets = [0, 96], sizes = [2, 32], strides = [1, 1]} : vector<2x128xf32> to vector<2x32xf32>
    %97 = arith.mulf %94, %82 : vector<2x32xf32>
    %98 = arith.mulf %93, %95 : vector<2x32xf32>
    %99 = arith.addf %97, %98 : vector<2x32xf32>
    %100 = math.tanh %99 : vector<2x32xf32>
    %101 = arith.mulf %96, %100 : vector<2x32xf32>
    %cst_21 = arith.constant dense<0.000000e+00> : vector<2x128xf32>
    %102 = tpu.matmul %101, %14, %cst_21 {dimension_numbers = #tpu.dot_dimension_numbers<[1], [0], [0], [1], [0, 0, 1, 1], [], []>} : vector<2x32xf32>, vector<32x128xf32>, vector<2x128xf32> -> vector<2x128xf32>
    %103 = arith.addf %11, %102 : vector<2x128xf32>
    %104 = arith.negf %103 : vector<2x128xf32>
    %105 = math.exp %104 : vector<2x128xf32>
    %cst_22 = arith.constant 1.000000e+00 : f32
    %106 = vector.broadcast %cst_22 : f32 to vector<2x128xf32>
    %107 = arith.addf %106, %105 : vector<2x128xf32>
    %108 = arith.divf %106, %107 : vector<2x128xf32>
    %109 = math.tanh %103 : vector<2x128xf32>
    %110 = vector.extract_strided_slice %108 {offsets = [0, 0], sizes = [2, 32], strides = [1, 1]} : vector<2x128xf32> to vector<2x32xf32>
    %111 = vector.extract_strided_slice %108 {offsets = [0, 32], sizes = [2, 32], strides = [1, 1]} : vector<2x128xf32> to vector<2x32xf32>
    %112 = vector.extract_strided_slice %109 {offsets = [0, 64], sizes = [2, 32], strides = [1, 1]} : vector<2x128xf32> to vector<2x32xf32>
    %113 = vector.extract_strided_slice %108 {offsets = [0, 96], sizes = [2, 32], strides = [1, 1]} : vector<2x128xf32> to vector<2x32xf32>
    %114 = arith.mulf %111, %99 : vector<2x32xf32>
    %115 = arith.mulf %110, %112 : vector<2x32xf32>
    %116 = arith.addf %114, %115 : vector<2x32xf32>
    %117 = math.tanh %116 : vector<2x32xf32>
    %118 = arith.mulf %113, %117 : vector<2x32xf32>
    %cst_23 = arith.constant dense<0.000000e+00> : vector<2x128xf32>
    %119 = tpu.matmul %118, %14, %cst_23 {dimension_numbers = #tpu.dot_dimension_numbers<[1], [0], [0], [1], [0, 0, 1, 1], [], []>} : vector<2x32xf32>, vector<32x128xf32>, vector<2x128xf32> -> vector<2x128xf32>
    %120 = arith.addf %12, %119 : vector<2x128xf32>
    %121 = arith.negf %120 : vector<2x128xf32>
    %122 = math.exp %121 : vector<2x128xf32>
    %cst_24 = arith.constant 1.000000e+00 : f32
    %123 = vector.broadcast %cst_24 : f32 to vector<2x128xf32>
    %124 = arith.addf %123, %122 : vector<2x128xf32>
    %125 = arith.divf %123, %124 : vector<2x128xf32>
    %126 = math.tanh %120 : vector<2x128xf32>
    %127 = vector.extract_strided_slice %125 {offsets = [0, 0], sizes = [2, 32], strides = [1, 1]} : vector<2x128xf32> to vector<2x32xf32>
    %128 = vector.extract_strided_slice %125 {offsets = [0, 32], sizes = [2, 32], strides = [1, 1]} : vector<2x128xf32> to vector<2x32xf32>
    %129 = vector.extract_strided_slice %126 {offsets = [0, 64], sizes = [2, 32], strides = [1, 1]} : vector<2x128xf32> to vector<2x32xf32>
    %130 = vector.extract_strided_slice %125 {offsets = [0, 96], sizes = [2, 32], strides = [1, 1]} : vector<2x128xf32> to vector<2x32xf32>
    %131 = arith.mulf %128, %116 : vector<2x32xf32>
    %132 = arith.mulf %127, %129 : vector<2x32xf32>
    %133 = arith.addf %131, %132 : vector<2x32xf32>
    %134 = math.tanh %133 : vector<2x32xf32>
    %135 = arith.mulf %130, %134 : vector<2x32xf32>
    %cst_25 = arith.constant dense<0.000000e+00> : vector<2x128xf32>
    %136 = tpu.matmul %135, %14, %cst_25 {dimension_numbers = #tpu.dot_dimension_numbers<[1], [0], [0], [1], [0, 0, 1, 1], [], []>} : vector<2x32xf32>, vector<32x128xf32>, vector<2x128xf32> -> vector<2x128xf32>
    %137 = arith.addf %13, %136 : vector<2x128xf32>
    %138 = arith.negf %137 : vector<2x128xf32>
    %139 = math.exp %138 : vector<2x128xf32>
    %cst_26 = arith.constant 1.000000e+00 : f32
    %140 = vector.broadcast %cst_26 : f32 to vector<2x128xf32>
    %141 = arith.addf %140, %139 : vector<2x128xf32>
    %142 = arith.divf %140, %141 : vector<2x128xf32>
    %143 = math.tanh %137 : vector<2x128xf32>
    %144 = vector.extract_strided_slice %142 {offsets = [0, 0], sizes = [2, 32], strides = [1, 1]} : vector<2x128xf32> to vector<2x32xf32>
    %145 = vector.extract_strided_slice %142 {offsets = [0, 32], sizes = [2, 32], strides = [1, 1]} : vector<2x128xf32> to vector<2x32xf32>
    %146 = vector.extract_strided_slice %143 {offsets = [0, 64], sizes = [2, 32], strides = [1, 1]} : vector<2x128xf32> to vector<2x32xf32>
    %147 = vector.extract_strided_slice %142 {offsets = [0, 96], sizes = [2, 32], strides = [1, 1]} : vector<2x128xf32> to vector<2x32xf32>
    %148 = arith.mulf %145, %133 : vector<2x32xf32>
    %149 = arith.mulf %144, %146 : vector<2x32xf32>
    %150 = arith.addf %148, %149 : vector<2x32xf32>
    %151 = math.tanh %150 : vector<2x32xf32>
    %152 = arith.mulf %147, %151 : vector<2x32xf32>
    %c0_27 = arith.constant 0 : index
    %c0_28 = arith.constant 0 : index
    %153 = vector.load %arg9[%c0_27, %c0_28] : memref<2x32xf32, #tpu.memory_space<vmem>>, vector<2x32xf32>
    tpu.vector_store %arg9[%c0_27, %c0_28], %152 {strides = array<i32>} : memref<2x32xf32, #tpu.memory_space<vmem>>, vector<2x32xf32>,
    %c0_29 = arith.constant 0 : index
    %c0_30 = arith.constant 0 : index
    %154 = vector.load %arg10[%c0_29, %c0_30] : memref<2x32xf32, #tpu.memory_space<vmem>>, vector<2x32xf32>
    tpu.vector_store %arg10[%c0_29, %c0_30], %150 {strides = array<i32>} : memref<2x32xf32, #tpu.memory_space<vmem>>, vector<2x32xf32>,
    %155 = tpu.concatenate %33, %50, %67, %84, %101, %118, %135, %152 in 0 : vector<2x32xf32>, vector<2x32xf32>, vector<2x32xf32>, vector<2x32xf32>, vector<2x32xf32>, vector<2x32xf32>, vector<2x32xf32>, vector<2x32xf32> -> vector<16x32xf32>
    %c0_31 = arith.constant 0 : index
    %c0_32 = arith.constant 0 : index
    %156 = vector.load %arg6[%c0_31, %c0_32] : memref<32x384xf32, #tpu.memory_space<vmem>>, vector<32x384xf32>
    %cst_33 = arith.constant dense<0.000000e+00> : vector<16x384xf32>
    %157 = tpu.matmul %155, %156, %cst_33 {dimension_numbers = #tpu.dot_dimension_numbers<[1], [0], [0], [1], [0, 0, 1, 1], [], []>} : vector<16x32xf32>, vector<32x384xf32>, vector<16x384xf32> -> vector<16x384xf32>
    %c0_34 = arith.constant 0 : index
    %c0_35 = arith.constant 0 : index
    %158 = vector.load %arg7[%c0_34, %c0_35] : memref<1x384xf32, #tpu.memory_space<vmem>>, vector<1x384xf32>
    %159 = vector.broadcast %158 : vector<1x384xf32> to vector<16x384xf32>
    %160 = arith.addf %157, %159 : vector<16x384xf32>
    %161 = vector.extract_strided_slice %160 {offsets = [0, 0], sizes = [16, 256], strides = [1, 1]} : vector<16x384xf32> to vector<16x256xf32>
    %c0_36 = arith.constant 0 : index
    %c0_37 = arith.constant 0 : index
    %162 = vector.load %arg8[%c0_36, %c0_37] : memref<16x384xf32, #tpu.memory_space<vmem>>, vector<16x256xf32>
    tpu.vector_store %arg8[%c0_36, %c0_37], %161 {strides = array<i32>} : memref<16x384xf32, #tpu.memory_space<vmem>>, vector<16x256xf32>,
    %163 = vector.extract_strided_slice %160 {offsets = [0, 256], sizes = [16, 128], strides = [1, 1]} : vector<16x384xf32> to vector<16x128xf32>
    %164 = math.exp %163 : vector<16x128xf32>
    %c0_38 = arith.constant 0 : index
    %c256 = arith.constant 256 : index
    %165 = vector.load %arg8[%c0_38, %c256] : memref<16x384xf32, #tpu.memory_space<vmem>>, vector<16x128xf32>
    tpu.vector_store %arg8[%c0_38, %c256], %164 {strides = array<i32>} : memref<16x384xf32, #tpu.memory_space<vmem>>, vector<16x128xf32>,
    return
  }
}

</mosaic_0001>

<llo_original>
// kernel: tpu_custom_call.1
$region0: #{tpu_custom_call.1}
  #allocation0 [shape = 'u32[]', space=smem, size = 0x4, offset = 0x4, fixed_abs, tag = 'smem constant byte address 0x4 - core index']
  #allocation1 [shape = 'u32[144,128]{1,0:T(1,128)}', space=vmem, size = 0x12000, scoped, tag = 'internal scratch']
  %s0 = inlined_call_operand.hbm [shape: f32[16,16], index: 0, kind: input, shape index: {}]
  %s1 = inlined_call_operand.vmem [shape: f32[2,32], index: 1, kind: input, shape index: {}]
  %s2 = inlined_call_operand.vmem [shape: f32[2,32], index: 2, kind: input, shape index: {}]
  %s3 = inlined_call_operand.hbm [shape: f32[16,128], index: 3, kind: input, shape index: {}]
  %s4 = inlined_call_operand.hbm [shape: f32[32,128], index: 4, kind: input, shape index: {}]
  %s5 = inlined_call_operand.vmem [shape: f32[1,128], index: 5, kind: input, shape index: {}]
  %s6 = inlined_call_operand.hbm [shape: f32[32,384], index: 6, kind: input, shape index: {}]
  %s7 = inlined_call_operand.vmem [shape: f32[1,384], index: 7, kind: input, shape index: {}]
  %s8 = inlined_call_operand.hbm [shape: f32[16,384], index: 8, kind: output, shape index: {0}]
  %s9 = inlined_call_operand.hbm [shape: f32[2,32], index: 9, kind: output, shape index: {1}]
  %s10 = inlined_call_operand.hbm [shape: f32[2,32], index: 10, kind: output, shape index: {2}]
  %11 = xla_tuple %s8, %s9, %s10
  %s12 = sld [smem:[#allocation0]]
  $region74: #{tpu_custom_call.1} parent=0
    _
  %s14 = ssub.s32 1, %s12
  %s15 = scalar_select 0, %s14, %s12
  $region1: #{tpu_custom_call.1} parent=0
    #allocation2 [shape = 'u8[8192]{0}', space=vmem, size = 0x2000, scoped, tag = 'input window, operand 0, single buffered']
    #allocation3 [shape = 's32[1]{0}', space=sflag, size = 0x4, scoped, tag = 'scoped memory for tpu_custom_call.1']
    #allocation4 [shape = 's32[1]{0}', space=sflag, size = 0x4, scoped, tag = 'scoped memory for tpu_custom_call.1']
    #allocation5 [shape = 'u8[8192]{0}', space=vmem, size = 0x2000, scoped, tag = 'input window, operand 3, single buffered']
    #allocation6 [shape = 's32[1]{0}', space=sflag, size = 0x4, scoped, tag = 'scoped memory for tpu_custom_call.1']
    #allocation7 [shape = 'u8[16384]{0}', space=vmem, size = 0x4000, scoped, tag = 'input window, operand 4, single buffered']
    #allocation8 [shape = 'u8[49152]{0}', space=vmem, size = 0xc000, scoped, tag = 'input window, operand 6, single buffered']
    #allocation9 [shape = 's32[1]{0}', space=sflag, size = 0x4, scoped, tag = 'scoped memory for tpu_custom_call.1']
    #allocation10 [shape = 'u8[24576]{0}', space=vmem, size = 0x6000, scoped, tag = 'output window, operand 0, single buffered']
    #allocation11 [shape = 'u8[1024]{0}', space=vmem, size = 0x400, scoped, tag = 'output window, operand 1, single buffered']
    #allocation12 [shape = 's32[1]{0}', space=sflag, size = 0x4, scoped, tag = 'scoped memory for tpu_custom_call.1']
    #allocation13 [shape = 'u8[1024]{0}', space=vmem, size = 0x400, scoped, tag = 'output window, operand 2, single buffered']
    %16 = vsyncpa [#allocation3], 0
    %17 = vsyncpa [#allocation6], 0
    %18 = vsyncpa [#allocation9], 0
    %19 = vsyncpa [#allocation4], 0
    %20 = vsyncpa [#allocation12], 0
    // Predicated region
    $region2: #{tpu_custom_call.1} parent=1 // pred_check
      _
    $region3: #{tpu_custom_call.1} parent=1 // pred_check_branch
      %22 = sbr.rel (0) target = $region5
    $region4: #{tpu_custom_call.1} parent=1 // pred_region
      %s24 = ssub.s32 256, 256
      %25 = vsyncadd [#allocation3], %s24
      %s26 = sshll.u32 [#allocation2], 4
      %s27 = int_to_ptr.vmem [resolvable:$true] %s26
      %32 = dma.hbm_to_vmem [thread:$0]  %s0, 256, %s27, [#allocation3], 128, 128, 8
    $region5: #{tpu_custom_call.1} parent=1 // pred_fallthru
      _
    // Predicated region
    $region6: #{tpu_custom_call.1} parent=1 // pred_check
      _
    $region7: #{tpu_custom_call.1} parent=1 // pred_check_branch
      %34 = sbr.rel (0) target = $region9
    $region8: #{tpu_custom_call.1} parent=1 // pred_region
      _
    $region9: #{tpu_custom_call.1} parent=1 // pred_fallthru
      _
    // Predicated region
    $region10: #{tpu_custom_call.1} parent=1 // pred_check
      _
    $region11: #{tpu_custom_call.1} parent=1 // pred_check_branch
      %36 = sbr.rel (0) target = $region13
    $region12: #{tpu_custom_call.1} parent=1 // pred_region
      _
    $region13: #{tpu_custom_call.1} parent=1 // pred_fallthru
      _
    // Predicated region
    $region14: #{tpu_custom_call.1} parent=1 // pred_check
      _
    $region15: #{tpu_custom_call.1} parent=1 // pred_check_branch
      %38 = sbr.rel (0) target = $region17
    $region16: #{tpu_custom_call.1} parent=1 // pred_region
      %s40 = ssub.s32 256, 256
      %41 = vsyncadd [#allocation6], %s40
      %s42 = sshll.u32 [#allocation5], 4
      %s43 = int_to_ptr.vmem [resolvable:$true] %s42
      %48 = dma.hbm_to_vmem [thread:$0]  %s3, 256, %s43, [#allocation6], 128, 128, 8
    $region17: #{tpu_custom_call.1} parent=1 // pred_fallthru
      _
    // Predicated region
    $region18: #{tpu_custom_call.1} parent=1 // pred_check
      _
    $region19: #{tpu_custom_call.1} parent=1 // pred_check_branch
      %50 = sbr.rel (0) target = $region21
    $region20: #{tpu_custom_call.1} parent=1 // pred_region
      %s52 = ssub.s32 512, 512
      %53 = vsyncadd [#allocation6], %s52
      %s54 = sshll.u32 [#allocation7], 4
      %s55 = int_to_ptr.vmem [resolvable:$true] %s54
      %60 = dma.hbm_to_vmem [thread:$0]  %s4, 512, %s55, [#allocation6], 128, 128, 8
    $region21: #{tpu_custom_call.1} parent=1 // pred_fallthru
      _
    // Predicated region
    $region22: #{tpu_custom_call.1} parent=1 // pred_check
      _
    $region23: #{tpu_custom_call.1} parent=1 // pred_check_branch
      %62 = sbr.rel (0) target = $region25
    $region24: #{tpu_custom_call.1} parent=1 // pred_region
      _
    $region25: #{tpu_custom_call.1} parent=1 // pred_fallthru
      _
    // Predicated region
    $region26: #{tpu_custom_call.1} parent=1 // pred_check
      _
    $region27: #{tpu_custom_call.1} parent=1 // pred_check_branch
      %64 = sbr.rel (0) target = $region29
    $region28: #{tpu_custom_call.1} parent=1 // pred_region
      %s66 = ssub.s32 1536, 1536
      %67 = vsyncadd [#allocation9], %s66
      %s68 = sshll.u32 [#allocation8], 4
      %s69 = int_to_ptr.vmem [resolvable:$true] %s68
      %74 = dma.hbm_to_vmem [thread:$0]  %s6, 1536, %s69, [#allocation9], 384, 384, 24
    $region29: #{tpu_custom_call.1} parent=1 // pred_fallthru
      _
    // Predicated region
    $region30: #{tpu_custom_call.1} parent=1 // pred_check
      _
    $region31: #{tpu_custom_call.1} parent=1 // pred_check_branch
      %76 = sbr.rel (0) target = $region33
    $region32: #{tpu_custom_call.1} parent=1 // pred_region
      _
    $region33: #{tpu_custom_call.1} parent=1 // pred_fallthru
      _
    // Predicated region
    $region34: #{tpu_custom_call.1} parent=1 // pred_check
      _
    $region35: #{tpu_custom_call.1} parent=1 // pred_check_branch
      %78 = sbr.rel (0) target = $region37
    $region36: #{tpu_custom_call.1} parent=1 // pred_region
      %79 = dma.done [#allocation3], 256
    $region37: #{tpu_custom_call.1} parent=1 // pred_fallthru
      _
    // Predicated region
    $region38: #{tpu_custom_call.1} parent=1 // pred_check
      _
    $region39: #{tpu_custom_call.1} parent=1 // pred_check_branch
      %81 = sbr.rel (0) target = $region41
    $region40: #{tpu_custom_call.1} parent=1 // pred_region
      %82 = dma.done [#allocation6], 256
    $region41: #{tpu_custom_call.1} parent=1 // pred_fallthru
      _
    // Predicated region
    $region42: #{tpu_custom_call.1} parent=1 // pred_check
      _
    $region43: #{tpu_custom_call.1} parent=1 // pred_check_branch
      %84 = sbr.rel (0) target = $region45
    $region44: #{tpu_custom_call.1} parent=1 // pred_region
      %85 = dma.done [#allocation6], 512
    $region45: #{tpu_custom_call.1} parent=1 // pred_fallthru
      _
    // Predicated region
    $region46: #{tpu_custom_call.1} parent=1 // pred_check
      _
    $region47: #{tpu_custom_call.1} parent=1 // pred_check_branch
      %87 = sbr.rel (0) target = $region49
    $region48: #{tpu_custom_call.1} parent=1 // pred_region
      %88 = dma.done [#allocation9], 1536
    $region49: #{tpu_custom_call.1} parent=1 // pred_fallthru
      _
    %v89 = vld [vmem:[#allocation2] sm:$0xff]
    %v90 = vld [vmem:[#allocation2 + $0x8] sm:$0xff]
    %v91 = vld [vmem:[#allocation5] sm:$0xff]
    %v92 = vld [vmem:[#allocation5 + $0x8] sm:$0xff]
    %v93 = vld [vmem:[%s5] sm:$0x1]
    %v95 = vlaneseq
    %v96 = vshrl.u32 %v95, 7
    %v97 = vsub.s32 0, %v96
    %v98 = vrot.slane %v93, %v97
    %vm100 = vcmask 130048
    %v102 = vsel %vm100, %v89, 0
    %v105 = vsel %vm100, %v90, 0
    %107 = vmatprep.subr.mxu0 0.0
    %108 = vmatpush1.msra.mxu0 %v91
    %109 = vmatprep.subr.mxu0 0.0
    %110 = vmatpush1.msra.mxu0 %v92
    %111 = vmatprep.subr.mxu0 0.0
    %112 = vmatpush1.msra.mxu0 0.0
    %113 = vmatprep.subr.mxu0 0.0
    %114 = vmatpush1.msra.mxu0 0.0
    %115 = vmatprep.subr.mxu0 0.0
    %116 = vmatpush1.msra.mxu0 0.0
    %117 = vmatprep.subr.mxu0 0.0
    %118 = vmatpush1.msra.mxu0 0.0
    %119 = vmatprep.subr.mxu0 0.0
    %120 = vmatpush1.msra.mxu0 0.0
    %121 = vmatprep.subr.mxu0 0.0
    %122 = vmatpush1.msra.mxu0 0.0
    %123 = vmatprep.subr.mxu0 0.0
    %124 = vmatpush1.msra.mxu0 0.0
    %125 = vmatprep.subr.mxu0 0.0
    %126 = vmatpush1.msra.mxu0 0.0
    %127 = vmatprep.subr.mxu0 0.0
    %128 = vmatpush1.msra.mxu0 0.0
    %129 = vmatprep.subr.mxu0 0.0
    %130 = vmatpush1.msra.mxu0 0.0
    %131 = vmatprep.subr.mxu0 0.0
    %132 = vmatpush1.msra.mxu0 0.0
    %133 = vmatprep.subr.mxu0 0.0
    %134 = vmatpush1.msra.mxu0 0.0
    %135 = vmatprep.subr.mxu0 0.0
    %136 = vmatpush1.msra.mxu0 0.0
    %137 = vmatprep.subr.mxu0 0.0
    %138 = vmatpush1.msra.mxu0 0.0
    %139 = vmatprep.subr.mxu0 0.0
    %140 = vmatpush1.msra.mxu0 0.0
    %141 = vmatprep.subr.mxu0 0.0
    %142 = vmatpush1.msra.mxu0 0.0
    %143 = vmatprep.subr.mxu0 0.0
    %144 = vmatpush1.msra.mxu0 0.0
    %145 = vmatprep.subr.mxu0 0.0
    %146 = vmatpush1.msra.mxu0 0.0
    %147 = vmatprep.subr.mxu0 0.0
    %148 = vmatpush1.msra.mxu0 0.0
    %149 = vmatprep.subr.mxu0 0.0
    %150 = vmatpush1.msra.mxu0 0.0
    %151 = vmatprep.subr.mxu0 0.0
    %152 = vmatpush1.msra.mxu0 0.0
    %153 = vmatprep.subr.mxu0 0.0
    %154 = vmatpush1.msra.mxu0 0.0
    %155 = vmatprep.subr.mxu0 0.0
    %156 = vmatpush1.msra.mxu0 0.0
    %157 = vmatprep.subr.mxu0 0.0
    %158 = vmatpush1.msra.mxu0 0.0
    %159 = vmatprep.subr.mxu0 0.0
    %160 = vmatpush1.msra.mxu0 0.0
    %161 = vmatprep.subr.mxu0 0.0
    %162 = vmatpush1.msra.mxu0 0.0
    %163 = vmatprep.subr.mxu0 0.0
    %164 = vmatpush1.msra.mxu0 0.0
    %165 = vmatprep.subr.mxu0 0.0
    %166 = vmatpush1.msra.mxu0 0.0
    %167 = vmatprep.subr.mxu0 0.0
    %168 = vmatpush1.msra.mxu0 0.0
    %169 = vmatprep.subr.mxu0 0.0
    %170 = vmatpush1.msra.mxu0 0.0
    %171 = vmatprep.mubr.f32.mxu0 0.0
    %172 = vmatmul.mubr.f32.gmra.mrb[0].mxu0 %v102
    %v173 = vpop.f32.mrb[0].mxu0
    %v174 = vadd.f32 %v98, %v173
    %v175 = vpop.f32.mrb[0].mxu0
    %176 = vmatprep.mubr.f32.mxu0 0.0
    %177 = vmatmul.mubr.f32.gmra.mrb[0].mxu0 %v105
    %v178 = vpop.f32.mrb[0].mxu0
    %v179 = vadd.f32 %v98, %v178
    %v180 = vpop.f32.mrb[0].mxu0
    %181 = vdwg.mxu0
    %v182 = vld [vmem:[#allocation7] sm:$0xff]
    %v183 = vld [vmem:[#allocation7 + $0x8] sm:$0xff]
    %v184 = vld [vmem:[#allocation7 + $0x10] sm:$0xff]
    %v185 = vld [vmem:[#allocation7 + $0x18] sm:$0xff]
    %v186 = vld [vmem:[%s1] sm:$0x3]
    %v187 = vld [vmem:[%s2] sm:$0x3]
    %vm188 = vcmask 261120
    %v190 = vsel %vm188, %v186, 0
    %192 = vmatprep.subr.mxu0 0.0
    %193 = vmatpush1.msra.mxu0 %v182
    %194 = vmatprep.subr.mxu0 0.0
    %195 = vmatpush1.msra.mxu0 %v183
    %196 = vmatprep.subr.mxu0 0.0
    %197 = vmatpush1.msra.mxu0 %v184
    %198 = vmatprep.subr.mxu0 0.0
    %199 = vmatpush1.msra.mxu0 %v185
    %200 = vmatprep.subr.mxu0 0.0
    %201 = vmatpush1.msra.mxu0 0.0
    %202 = vmatprep.subr.mxu0 0.0
    %203 = vmatpush1.msra.mxu0 0.0
    %204 = vmatprep.subr.mxu0 0.0
    %205 = vmatpush1.msra.mxu0 0.0
    %206 = vmatprep.subr.mxu0 0.0
    %207 = vmatpush1.msra.mxu0 0.0
    %208 = vmatprep.subr.mxu0 0.0
    %209 = vmatpush1.msra.mxu0 0.0
    %210 = vmatprep.subr.mxu0 0.0
    %211 = vmatpush1.msra.mxu0 0.0
    %212 = vmatprep.subr.mxu0 0.0
    %213 = vmatpush1.msra.mxu0 0.0
    %214 = vmatprep.subr.mxu0 0.0
    %215 = vmatpush1.msra.mxu0 0.0
    %216 = vmatprep.subr.mxu0 0.0
    %217 = vmatpush1.msra.mxu0 0.0
    %218 = vmatprep.subr.mxu0 0.0
    %219 = vmatpush1.msra.mxu0 0.0
    %220 = vmatprep.subr.mxu0 0.0
    %221 = vmatpush1.msra.mxu0 0.0
    %222 = vmatprep.subr.mxu0 0.0
    %223 = vmatpush1.msra.mxu0 0.0
    %224 = vmatprep.subr.mxu0 0.0
    %225 = vmatpush1.msra.mxu0 0.0
    %226 = vmatprep.subr.mxu0 0.0
    %227 = vmatpush1.msra.mxu0 0.0
    %228 = vmatprep.subr.mxu0 0.0
    %229 = vmatpush1.msra.mxu0 0.0
    %230 = vmatprep.subr.mxu0 0.0
    %231 = vmatpush1.msra.mxu0 0.0
    %232 = vmatprep.subr.mxu0 0.0
    %233 = vmatpush1.msra.mxu0 0.0
    %234 = vmatprep.subr.mxu0 0.0
    %235 = vmatpush1.msra.mxu0 0.0
    %236 = vmatprep.subr.mxu0 0.0
    %237 = vmatpush1.msra.mxu0 0.0
    %238 = vmatprep.subr.mxu0 0.0
    %239 = vmatpush1.msra.mxu0 0.0
    %240 = vmatprep.subr.mxu0 0.0
    %241 = vmatpush1.msra.mxu0 0.0
    %242 = vmatprep.subr.mxu0 0.0
    %243 = vmatpush1.msra.mxu0 0.0
    %244 = vmatprep.subr.mxu0 0.0
    %245 = vmatpush1.msra.mxu0 0.0
    %246 = vmatprep.subr.mxu0 0.0
    %247 = vmatpush1.msra.mxu0 0.0
    %248 = vmatprep.subr.mxu0 0.0
    %249 = vmatpush1.msra.mxu0 0.0
    %250 = vmatprep.subr.mxu0 0.0
    %251 = vmatpush1.msra.mxu0 0.0
    %252 = vmatprep.subr.mxu0 0.0
    %253 = vmatpush1.msra.mxu0 0.0
    %254 = vmatprep.subr.mxu0 0.0
    %255 = vmatpush1.msra.mxu0 0.0
    %256 = vmatprep.mubr.f32.mxu0 0.0
    %257 = vmatmul.mubr.f32.gmra.mrb[0].mxu0 %v190
    %v258 = vpop.f32.mrb[0].mxu0
    %v259 = vadd.f32 0.0, %v258
    %v260 = vpop.f32.mrb[0].mxu0
    %261 = vdwg.mxu0
    %v262 = vadd.f32 %v174, %v259
    %v263 = vxor.u32 %v262, 2147483648
    %v264 = vmul.f32 %v263, 1.442695
    %v265 = vpow.pop %v264
    %v266 = vadd.f32 %v265, 1.0
    %v267 = vrcp.pop %v266
    %v268 = vmul.f32 1.0, %v267
    %v269 = vtanh.pop %v262
    %271 = vrot.lane.b32.xlu0 %v187, 32
    %v272 = vpop.permute.xlu0 %271
    %v274 = vmul.f32 %v268, %v272
    %276 = vrot.lane.b32.xlu0 %v269, 64
    %v277 = vpop.permute.xlu0 %276
    %v279 = vmul.f32 %v268, %v277
    %281 = vrot.lane.b32.xlu0 %v279, 32
    %v282 = vpop.permute.xlu0 %281
    %v284 = vadd.f32 %v274, %v282
    %v285 = vtanh.pop %v284
    %287 = vrot.lane.b32.xlu0 %v285, 64
    %v288 = vpop.permute.xlu0 %287
    %v290 = vmul.f32 %v268, %v288
    %292 = vrot.lane.b32.xlu0 %v290, 32
    %v293 = vpop.permute.xlu0 %292
    %v294 = vsel %vm188, %v293, 0
    %296 = vmatprep.subr.mxu0 0.0
    %297 = vmatpush1.msra.mxu0 %v182
    %298 = vmatprep.subr.mxu0 0.0
    %299 = vmatpush1.msra.mxu0 %v183
    %300 = vmatprep.subr.mxu0 0.0
    %301 = vmatpush1.msra.mxu0 %v184
    %302 = vmatprep.subr.mxu0 0.0
    %303 = vmatpush1.msra.mxu0 %v185
    %304 = vmatprep.subr.mxu0 0.0
    %305 = vmatpush1.msra.mxu0 0.0
    %306 = vmatprep.subr.mxu0 0.0
    %307 = vmatpush1.msra.mxu0 0.0
    %308 = vmatprep.subr.mxu0 0.0
    %309 = vmatpush1.msra.mxu0 0.0
    %310 = vmatprep.subr.mxu0 0.0
    %311 = vmatpush1.msra.mxu0 0.0
    %312 = vmatprep.subr.mxu0 0.0
    %313 = vmatpush1.msra.mxu0 0.0
    %314 = vmatprep.subr.mxu0 0.0
    %315 = vmatpush1.msra.mxu0 0.0
    %316 = vmatprep.subr.mxu0 0.0
    %317 = vmatpush1.msra.mxu0 0.0
    %318 = vmatprep.subr.mxu0 0.0
    %319 = vmatpush1.msra.mxu0 0.0
    %320 = vmatprep.subr.mxu0 0.0
    %321 = vmatpush1.msra.mxu0 0.0
    %322 = vmatprep.subr.mxu0 0.0
    %323 = vmatpush1.msra.mxu0 0.0
    %324 = vmatprep.subr.mxu0 0.0
    %325 = vmatpush1.msra.mxu0 0.0
    %326 = vmatprep.subr.mxu0 0.0
    %327 = vmatpush1.msra.mxu0 0.0
    %328 = vmatprep.subr.mxu0 0.0
    %329 = vmatpush1.msra.mxu0 0.0
    %330 = vmatprep.subr.mxu0 0.0
    %331 = vmatpush1.msra.mxu0 0.0
    %332 = vmatprep.subr.mxu0 0.0
    %333 = vmatpush1.msra.mxu0 0.0
    %334 = vmatprep.subr.mxu0 0.0
    %335 = vmatpush1.msra.mxu0 0.0
    %336 = vmatprep.subr.mxu0 0.0
    %337 = vmatpush1.msra.mxu0 0.0
    %338 = vmatprep.subr.mxu0 0.0
    %339 = vmatpush1.msra.mxu0 0.0
    %340 = vmatprep.subr.mxu0 0.0
    %341 = vmatpush1.msra.mxu0 0.0
    %342 = vmatprep.subr.mxu0 0.0
    %343 = vmatpush1.msra.mxu0 0.0
    %344 = vmatprep.subr.mxu0 0.0
    %345 = vmatpush1.msra.mxu0 0.0
    %346 = vmatprep.subr.mxu0 0.0
    %347 = vmatpush1.msra.mxu0 0.0
    %348 = vmatprep.subr.mxu0 0.0
    %349 = vmatpush1.msra.mxu0 0.0
    %350 = vmatprep.subr.mxu0 0.0
    %351 = vmatpush1.msra.mxu0 0.0
    %352 = vmatprep.subr.mxu0 0.0
    %353 = vmatpush1.msra.mxu0 0.0
    %354 = vmatprep.subr.mxu0 0.0
    %355 = vmatpush1.msra.mxu0 0.0
    %356 = vmatprep.subr.mxu0 0.0
    %357 = vmatpush1.msra.mxu0 0.0
    %358 = vmatprep.subr.mxu0 0.0
    %359 = vmatpush1.msra.mxu0 0.0
    %360 = vmatprep.mubr.f32.mxu0 0.0
    %361 = vmatmul.mubr.f32.gmra.mrb[0].mxu0 %v294
    %v362 = vpop.f32.mrb[0].mxu0
    %v363 = vadd.f32 0.0, %v362
    %v364 = vpop.f32.mrb[0].mxu0
    %365 = vdwg.mxu0
    %v367 = vrot.slane %v363, 6
    %v369 = vadd.f32 %v174, %v367
    %v370 = vxor.u32 %v369, 2147483648
    %v371 = vmul.f32 %v370, 1.442695
    %v372 = vpow.pop %v371
    %v373 = vadd.f32 %v372, 1.0
    %v374 = vrcp.pop %v373
    %v375 = vmul.f32 1.0, %v374
    %v376 = vtanh.pop %v369
    %v378 = vrot.slane %v284, 6
    %v380 = vmul.f32 %v375, %v378
    %382 = vrot.lane.b32.xlu0 %v376, 64
    %v383 = vpop.permute.xlu0 %382
    %v385 = vmul.f32 %v375, %v383
    %387 = vrot.lane.b32.xlu0 %v385, 32
    %v388 = vpop.permute.xlu0 %387
    %v390 = vadd.f32 %v380, %v388
    %v391 = vtanh.pop %v390
    %393 = vrot.lane.b32.xlu0 %v391, 64
    %v394 = vpop.permute.xlu0 %393
    %v396 = vmul.f32 %v375, %v394
    %v398 = vrot.slane %v396, 2
    %399 = vrot.lane.b32.xlu0 %v398, 32
    %v400 = vpop.permute.xlu0 %399
    %v401 = vsel %vm188, %v400, 0
    %403 = vmatprep.subr.mxu0 0.0
    %404 = vmatpush1.msra.mxu0 %v182
    %405 = vmatprep.subr.mxu0 0.0
    %406 = vmatpush1.msra.mxu0 %v183
    %407 = vmatprep.subr.mxu0 0.0
    %408 = vmatpush1.msra.mxu0 %v184
    %409 = vmatprep.subr.mxu0 0.0
    %410 = vmatpush1.msra.mxu0 %v185
    %411 = vmatprep.subr.mxu0 0.0
    %412 = vmatpush1.msra.mxu0 0.0
    %413 = vmatprep.subr.mxu0 0.0
    %414 = vmatpush1.msra.mxu0 0.0
    %415 = vmatprep.subr.mxu0 0.0
    %416 = vmatpush1.msra.mxu0 0.0
    %417 = vmatprep.subr.mxu0 0.0
    %418 = vmatpush1.msra.mxu0 0.0
    %419 = vmatprep.subr.mxu0 0.0
    %420 = vmatpush1.msra.mxu0 0.0
    %421 = vmatprep.subr.mxu0 0.0
    %422 = vmatpush1.msra.mxu0 0.0
    %423 = vmatprep.subr.mxu0 0.0
    %424 = vmatpush1.msra.mxu0 0.0
    %425 = vmatprep.subr.mxu0 0.0
    %426 = vmatpush1.msra.mxu0 0.0
    %427 = vmatprep.subr.mxu0 0.0
    %428 = vmatpush1.msra.mxu0 0.0
    %429 = vmatprep.subr.mxu0 0.0
    %430 = vmatpush1.msra.mxu0 0.0
    %431 = vmatprep.subr.mxu0 0.0
    %432 = vmatpush1.msra.mxu0 0.0
    %433 = vmatprep.subr.mxu0 0.0
    %434 = vmatpush1.msra.mxu0 0.0
    %435 = vmatprep.subr.mxu0 0.0
    %436 = vmatpush1.msra.mxu0 0.0
    %437 = vmatprep.subr.mxu0 0.0
    %438 = vmatpush1.msra.mxu0 0.0
    %439 = vmatprep.subr.mxu0 0.0
    %440 = vmatpush1.msra.mxu0 0.0
    %441 = vmatprep.subr.mxu0 0.0
    %442 = vmatpush1.msra.mxu0 0.0
    %443 = vmatprep.subr.mxu0 0.0
    %444 = vmatpush1.msra.mxu0 0.0
    %445 = vmatprep.subr.mxu0 0.0
    %446 = vmatpush1.msra.mxu0 0.0
    %447 = vmatprep.subr.mxu0 0.0
    %448 = vmatpush1.msra.mxu0 0.0
    %449 = vmatprep.subr.mxu0 0.0
    %450 = vmatpush1.msra.mxu0 0.0
    %451 = vmatprep.subr.mxu0 0.0
    %452 = vmatpush1.msra.mxu0 0.0
    %453 = vmatprep.subr.mxu0 0.0
    %454 = vmatpush1.msra.mxu0 0.0
    %455 = vmatprep.subr.mxu0 0.0
    %456 = vmatpush1.msra.mxu0 0.0
    %457 = vmatprep.subr.mxu0 0.0
    %458 = vmatpush1.msra.mxu0 0.0
    %459 = vmatprep.subr.mxu0 0.0
    %460 = vmatpush1.msra.mxu0 0.0
    %461 = vmatprep.subr.mxu0 0.0
    %462 = vmatpush1.msra.mxu0 0.0
    %463 = vmatprep.subr.mxu0 0.0
    %464 = vmatpush1.msra.mxu0 0.0
    %465 = vmatprep.subr.mxu0 0.0
    %466 = vmatpush1.msra.mxu0 0.0
    %467 = vmatprep.mubr.f32.mxu0 0.0
    %468 = vmatmul.mubr.f32.gmra.mrb[0].mxu0 %v401
    %v469 = vpop.f32.mrb[0].mxu0
    %v470 = vadd.f32 0.0, %v469
    %v471 = vpop.f32.mrb[0].mxu0
    %472 = vdwg.mxu0
    %v474 = vrot.slane %v470, 4
    %v476 = vadd.f32 %v174, %v474
    %v477 = vxor.u32 %v476, 2147483648
    %v478 = vmul.f32 %v477, 1.442695
    %v479 = vpow.pop %v478
    %v480 = vadd.f32 %v479, 1.0
    %v481 = vrcp.pop %v480
    %v482 = vmul.f32 1.0, %v481
    %v483 = vtanh.pop %v476
    %v485 = vrot.slane %v390, 6
    %v487 = vmul.f32 %v482, %v485
    %489 = vrot.lane.b32.xlu0 %v483, 64
    %v490 = vpop.permute.xlu0 %489
    %v492 = vmul.f32 %v482, %v490
    %494 = vrot.lane.b32.xlu0 %v492, 32
    %v495 = vpop.permute.xlu0 %494
    %v497 = vadd.f32 %v487, %v495
    %v498 = vtanh.pop %v497
    %500 = vrot.lane.b32.xlu0 %v498, 64
    %v501 = vpop.permute.xlu0 %500
    %v503 = vmul.f32 %v482, %v501
    %v505 = vrot.slane %v503, 4
    %506 = vrot.lane.b32.xlu0 %v505, 32
    %v507 = vpop.permute.xlu0 %506
    %v508 = vsel %vm188, %v507, 0
    %510 = vmatprep.subr.mxu0 0.0
    %511 = vmatpush1.msra.mxu0 %v182
    %512 = vmatprep.subr.mxu0 0.0
    %513 = vmatpush1.msra.mxu0 %v183
    %514 = vmatprep.subr.mxu0 0.0
    %515 = vmatpush1.msra.mxu0 %v184
    %516 = vmatprep.subr.mxu0 0.0
    %517 = vmatpush1.msra.mxu0 %v185
    %518 = vmatprep.subr.mxu0 0.0
    %519 = vmatpush1.msra.mxu0 0.0
    %520 = vmatprep.subr.mxu0 0.0
    %521 = vmatpush1.msra.mxu0 0.0
    %522 = vmatprep.subr.mxu0 0.0
    %523 = vmatpush1.msra.mxu0 0.0
    %524 = vmatprep.subr.mxu0 0.0
    %525 = vmatpush1.msra.mxu0 0.0
    %526 = vmatprep.subr.mxu0 0.0
    %527 = vmatpush1.msra.mxu0 0.0
    %528 = vmatprep.subr.mxu0 0.0
    %529 = vmatpush1.msra.mxu0 0.0
    %530 = vmatprep.subr.mxu0 0.0
    %531 = vmatpush1.msra.mxu0 0.0
    %532 = vmatprep.subr.mxu0 0.0
    %533 = vmatpush1.msra.mxu0 0.0
    %534 = vmatprep.subr.mxu0 0.0
    %535 = vmatpush1.msra.mxu0 0.0
    %536 = vmatprep.subr.mxu0 0.0
    %537 = vmatpush1.msra.mxu0 0.0
    %538 = vmatprep.subr.mxu0 0.0
    %539 = vmatpush1.msra.mxu0 0.0
    %540 = vmatprep.subr.mxu0 0.0
    %541 = vmatpush1.msra.mxu0 0.0
    %542 = vmatprep.subr.mxu0 0.0
    %543 = vmatpush1.msra.mxu0 0.0
    %544 = vmatprep.subr.mxu0 0.0
    %545 = vmatpush1.msra.mxu0 0.0
    %546 = vmatprep.subr.mxu0 0.0
    %547 = vmatpush1.msra.mxu0 0.0
    %548 = vmatprep.subr.mxu0 0.0
    %549 = vmatpush1.msra.mxu0 0.0
    %550 = vmatprep.subr.mxu0 0.0
    %551 = vmatpush1.msra.mxu0 0.0
    %552 = vmatprep.subr.mxu0 0.0
    %553 = vmatpush1.msra.mxu0 0.0
    %554 = vmatprep.subr.mxu0 0.0
    %555 = vmatpush1.msra.mxu0 0.0
    %556 = vmatprep.subr.mxu0 0.0
    %557 = vmatpush1.msra.mxu0 0.0
    %558 = vmatprep.subr.mxu0 0.0
    %559 = vmatpush1.msra.mxu0 0.0
    %560 = vmatprep.subr.mxu0 0.0
    %561 = vmatpush1.msra.mxu0 0.0
    %562 = vmatprep.subr.mxu0 0.0
    %563 = vmatpush1.msra.mxu0 0.0
    %564 = vmatprep.subr.mxu0 0.0
    %565 = vmatpush1.msra.mxu0 0.0
    %566 = vmatprep.subr.mxu0 0.0
    %567 = vmatpush1.msra.mxu0 0.0
    %568 = vmatprep.subr.mxu0 0.0
    %569 = vmatpush1.msra.mxu0 0.0
    %570 = vmatprep.subr.mxu0 0.0
    %571 = vmatpush1.msra.mxu0 0.0
    %572 = vmatprep.subr.mxu0 0.0
    %573 = vmatpush1.msra.mxu0 0.0
    %574 = vmatprep.mubr.f32.mxu0 0.0
    %575 = vmatmul.mubr.f32.gmra.mrb[0].mxu0 %v508
    %v576 = vpop.f32.mrb[0].mxu0
    %v577 = vadd.f32 0.0, %v576
    %v578 = vpop.f32.mrb[0].mxu0
    %579 = vdwg.mxu0
    %v581 = vrot.slane %v577, 2
    %v583 = vadd.f32 %v174, %v581
    %v584 = vxor.u32 %v583, 2147483648
    %v585 = vmul.f32 %v584, 1.442695
    %v586 = vpow.pop %v585
    %v587 = vadd.f32 %v586, 1.0
    %v588 = vrcp.pop %v587
    %v589 = vmul.f32 1.0, %v588
    %v590 = vtanh.pop %v583
    %v592 = vrot.slane %v497, 6
    %v594 = vmul.f32 %v589, %v592
    %596 = vrot.lane.b32.xlu0 %v590, 64
    %v597 = vpop.permute.xlu0 %596
    %v599 = vmul.f32 %v589, %v597
    %601 = vrot.lane.b32.xlu0 %v599, 32
    %v602 = vpop.permute.xlu0 %601
    %v604 = vadd.f32 %v594, %v602
    %v605 = vtanh.pop %v604
    %607 = vrot.lane.b32.xlu0 %v605, 64
    %v608 = vpop.permute.xlu0 %607
    %v610 = vmul.f32 %v589, %v608
    %v612 = vrot.slane %v610, 6
    %613 = vrot.lane.b32.xlu0 %v612, 32
    %v614 = vpop.permute.xlu0 %613
    %v615 = vsel %vm188, %v614, 0
    %617 = vmatprep.subr.mxu0 0.0
    %618 = vmatpush1.msra.mxu0 %v182
    %619 = vmatprep.subr.mxu0 0.0
    %620 = vmatpush1.msra.mxu0 %v183
    %621 = vmatprep.subr.mxu0 0.0
    %622 = vmatpush1.msra.mxu0 %v184
    %623 = vmatprep.subr.mxu0 0.0
    %624 = vmatpush1.msra.mxu0 %v185
    %625 = vmatprep.subr.mxu0 0.0
    %626 = vmatpush1.msra.mxu0 0.0
    %627 = vmatprep.subr.mxu0 0.0
    %628 = vmatpush1.msra.mxu0 0.0
    %629 = vmatprep.subr.mxu0 0.0
    %630 = vmatpush1.msra.mxu0 0.0
    %631 = vmatprep.subr.mxu0 0.0
    %632 = vmatpush1.msra.mxu0 0.0
    %633 = vmatprep.subr.mxu0 0.0
    %634 = vmatpush1.msra.mxu0 0.0
    %635 = vmatprep.subr.mxu0 0.0
    %636 = vmatpush1.msra.mxu0 0.0
    %637 = vmatprep.subr.mxu0 0.0
    %638 = vmatpush1.msra.mxu0 0.0
    %639 = vmatprep.subr.mxu0 0.0
    %640 = vmatpush1.msra.mxu0 0.0
    %641 = vmatprep.subr.mxu0 0.0
    %642 = vmatpush1.msra.mxu0 0.0
    %643 = vmatprep.subr.mxu0 0.0
    %644 = vmatpush1.msra.mxu0 0.0
    %645 = vmatprep.subr.mxu0 0.0
    %646 = vmatpush1.msra.mxu0 0.0
    %647 = vmatprep.subr.mxu0 0.0
    %648 = vmatpush1.msra.mxu0 0.0
    %649 = vmatprep.subr.mxu0 0.0
    %650 = vmatpush1.msra.mxu0 0.0
    %651 = vmatprep.subr.mxu0 0.0
    %652 = vmatpush1.msra.mxu0 0.0
    %653 = vmatprep.subr.mxu0 0.0
    %654 = vmatpush1.msra.mxu0 0.0
    %655 = vmatprep.subr.mxu0 0.0
    %656 = vmatpush1.msra.mxu0 0.0
    %657 = vmatprep.subr.mxu0 0.0
    %658 = vmatpush1.msra.mxu0 0.0
    %659 = vmatprep.subr.mxu0 0.0
    %660 = vmatpush1.msra.mxu0 0.0
    %661 = vmatprep.subr.mxu0 0.0
    %662 = vmatpush1.msra.mxu0 0.0
    %663 = vmatprep.subr.mxu0 0.0
    %664 = vmatpush1.msra.mxu0 0.0
    %665 = vmatprep.subr.mxu0 0.0
    %666 = vmatpush1.msra.mxu0 0.0
    %667 = vmatprep.subr.mxu0 0.0
    %668 = vmatpush1.msra.mxu0 0.0
    %669 = vmatprep.subr.mxu0 0.0
    %670 = vmatpush1.msra.mxu0 0.0
    %671 = vmatprep.subr.mxu0 0.0
    %672 = vmatpush1.msra.mxu0 0.0
    %673 = vmatprep.subr.mxu0 0.0
    %674 = vmatpush1.msra.mxu0 0.0
    %675 = vmatprep.subr.mxu0 0.0
    %676 = vmatpush1.msra.mxu0 0.0
    %677 = vmatprep.subr.mxu0 0.0
    %678 = vmatpush1.msra.mxu0 0.0
    %679 = vmatprep.subr.mxu0 0.0
    %680 = vmatpush1.msra.mxu0 0.0
    %681 = vmatprep.mubr.f32.mxu0 0.0
    %682 = vmatmul.mubr.f32.gmra.mrb[0].mxu0 %v615
    %v683 = vpop.f32.mrb[0].mxu0
    %v684 = vadd.f32 0.0, %v683
    %v685 = vpop.f32.mrb[0].mxu0
    %686 = vdwg.mxu0
    %v687 = vadd.f32 %v179, %v684
    %v688 = vxor.u32 %v687, 2147483648
    %v689 = vmul.f32 %v688, 1.442695
    %v690 = vpow.pop %v689
    %v691 = vadd.f32 %v690, 1.0
    %v692 = vrcp.pop %v691
    %v693 = vmul.f32 1.0, %v692
    %v694 = vtanh.pop %v687
    %v696 = vrot.slane %v604, 6
    %v698 = vmul.f32 %v693, %v696
    %700 = vrot.lane.b32.xlu0 %v694, 64
    %v701 = vpop.permute.xlu0 %700
    %v703 = vmul.f32 %v693, %v701
    %705 = vrot.lane.b32.xlu0 %v703, 32
    %v706 = vpop.permute.xlu0 %705
    %v708 = vadd.f32 %v698, %v706
    %v709 = vtanh.pop %v708
    %711 = vrot.lane.b32.xlu0 %v709, 64
    %v712 = vpop.permute.xlu0 %711
    %v714 = vmul.f32 %v693, %v712
    %716 = vrot.lane.b32.xlu0 %v714, 32
    %v717 = vpop.permute.xlu0 %716
    %v718 = vsel %vm188, %v717, 0
    %720 = vmatprep.subr.mxu0 0.0
    %721 = vmatpush1.msra.mxu0 %v182
    %722 = vmatprep.subr.mxu0 0.0
    %723 = vmatpush1.msra.mxu0 %v183
    %724 = vmatprep.subr.mxu0 0.0
    %725 = vmatpush1.msra.mxu0 %v184
    %726 = vmatprep.subr.mxu0 0.0
    %727 = vmatpush1.msra.mxu0 %v185
    %728 = vmatprep.subr.mxu0 0.0
    %729 = vmatpush1.msra.mxu0 0.0
    %730 = vmatprep.subr.mxu0 0.0
    %731 = vmatpush1.msra.mxu0 0.0
    %732 = vmatprep.subr.mxu0 0.0
    %733 = vmatpush1.msra.mxu0 0.0
    %734 = vmatprep.subr.mxu0 0.0
    %735 = vmatpush1.msra.mxu0 0.0
    %736 = vmatprep.subr.mxu0 0.0
    %737 = vmatpush1.msra.mxu0 0.0
    %738 = vmatprep.subr.mxu0 0.0
    %739 = vmatpush1.msra.mxu0 0.0
    %740 = vmatprep.subr.mxu0 0.0
    %741 = vmatpush1.msra.mxu0 0.0
    %742 = vmatprep.subr.mxu0 0.0
    %743 = vmatpush1.msra.mxu0 0.0
    %744 = vmatprep.subr.mxu0 0.0
    %745 = vmatpush1.msra.mxu0 0.0
    %746 = vmatprep.subr.mxu0 0.0
    %747 = vmatpush1.msra.mxu0 0.0
    %748 = vmatprep.subr.mxu0 0.0
    %749 = vmatpush1.msra.mxu0 0.0
    %750 = vmatprep.subr.mxu0 0.0
    %751 = vmatpush1.msra.mxu0 0.0
    %752 = vmatprep.subr.mxu0 0.0
    %753 = vmatpush1.msra.mxu0 0.0
    %754 = vmatprep.subr.mxu0 0.0
    %755 = vmatpush1.msra.mxu0 0.0
    %756 = vmatprep.subr.mxu0 0.0
    %757 = vmatpush1.msra.mxu0 0.0
    %758 = vmatprep.subr.mxu0 0.0
    %759 = vmatpush1.msra.mxu0 0.0
    %760 = vmatprep.subr.mxu0 0.0
    %761 = vmatpush1.msra.mxu0 0.0
    %762 = vmatprep.subr.mxu0 0.0
    %763 = vmatpush1.msra.mxu0 0.0
    %764 = vmatprep.subr.mxu0 0.0
    %765 = vmatpush1.msra.mxu0 0.0
    %766 = vmatprep.subr.mxu0 0.0
    %767 = vmatpush1.msra.mxu0 0.0
    %768 = vmatprep.subr.mxu0 0.0
    %769 = vmatpush1.msra.mxu0 0.0
    %770 = vmatprep.subr.mxu0 0.0
    %771 = vmatpush1.msra.mxu0 0.0
    %772 = vmatprep.subr.mxu0 0.0
    %773 = vmatpush1.msra.mxu0 0.0
    %774 = vmatprep.subr.mxu0 0.0
    %775 = vmatpush1.msra.mxu0 0.0
    %776 = vmatprep.subr.mxu0 0.0
    %777 = vmatpush1.msra.mxu0 0.0
    %778 = vmatprep.subr.mxu0 0.0
    %779 = vmatpush1.msra.mxu0 0.0
    %780 = vmatprep.subr.mxu0 0.0
    %781 = vmatpush1.msra.mxu0 0.0
    %782 = vmatprep.subr.mxu0 0.0
    %783 = vmatpush1.msra.mxu0 0.0
    %784 = vmatprep.mubr.f32.mxu0 0.0
    %785 = vmatmul.mubr.f32.gmra.mrb[0].mxu0 %v718
    %v786 = vpop.f32.mrb[0].mxu0
    %v787 = vadd.f32 0.0, %v786
    %v788 = vpop.f32.mrb[0].mxu0
    %789 = vdwg.mxu0
    %v791 = vrot.slane %v787, 6
    %v793 = vadd.f32 %v179, %v791
    %v794 = vxor.u32 %v793, 2147483648
    %v795 = vmul.f32 %v794, 1.442695
    %v796 = vpow.pop %v795
    %v797 = vadd.f32 %v796, 1.0
    %v798 = vrcp.pop %v797
    %v799 = vmul.f32 1.0, %v798
    %v800 = vtanh.pop %v793
    %v802 = vrot.slane %v708, 6
    %v804 = vmul.f32 %v799, %v802
    %806 = vrot.lane.b32.xlu0 %v800, 64
    %v807 = vpop.permute.xlu0 %806
    %v809 = vmul.f32 %v799, %v807
    %811 = vrot.lane.b32.xlu0 %v809, 32
    %v812 = vpop.permute.xlu0 %811
    %v814 = vadd.f32 %v804, %v812
    %v815 = vtanh.pop %v814
    %817 = vrot.lane.b32.xlu0 %v815, 64
    %v818 = vpop.permute.xlu0 %817
    %v820 = vmul.f32 %v799, %v818
    %v822 = vrot.slane %v820, 2
    %823 = vrot.lane.b32.xlu0 %v822, 32
    %v824 = vpop.permute.xlu0 %823
    %v825 = vsel %vm188, %v824, 0
    %827 = vmatprep.subr.mxu0 0.0
    %828 = vmatpush1.msra.mxu0 %v182
    %829 = vmatprep.subr.mxu0 0.0
    %830 = vmatpush1.msra.mxu0 %v183
    %831 = vmatprep.subr.mxu0 0.0
    %832 = vmatpush1.msra.mxu0 %v184
    %833 = vmatprep.subr.mxu0 0.0
    %834 = vmatpush1.msra.mxu0 %v185
    %835 = vmatprep.subr.mxu0 0.0
    %836 = vmatpush1.msra.mxu0 0.0
    %837 = vmatprep.subr.mxu0 0.0
    %838 = vmatpush1.msra.mxu0 0.0
    %839 = vmatprep.subr.mxu0 0.0
    %840 = vmatpush1.msra.mxu0 0.0
    %841 = vmatprep.subr.mxu0 0.0
    %842 = vmatpush1.msra.mxu0 0.0
    %843 = vmatprep.subr.mxu0 0.0
    %844 = vmatpush1.msra.mxu0 0.0
    %845 = vmatprep.subr.mxu0 0.0
    %846 = vmatpush1.msra.mxu0 0.0
    %847 = vmatprep.subr.mxu0 0.0
    %848 = vmatpush1.msra.mxu0 0.0
    %849 = vmatprep.subr.mxu0 0.0
    %850 = vmatpush1.msra.mxu0 0.0
    %851 = vmatprep.subr.mxu0 0.0
    %852 = vmatpush1.msra.mxu0 0.0
    %853 = vmatprep.subr.mxu0 0.0
    %854 = vmatpush1.msra.mxu0 0.0
    %855 = vmatprep.subr.mxu0 0.0
    %856 = vmatpush1.msra.mxu0 0.0
    %857 = vmatprep.subr.mxu0 0.0
    %858 = vmatpush1.msra.mxu0 0.0
    %859 = vmatprep.subr.mxu0 0.0
    %860 = vmatpush1.msra.mxu0 0.0
    %861 = vmatprep.subr.mxu0 0.0
    %862 = vmatpush1.msra.mxu0 0.0
    %863 = vmatprep.subr.mxu0 0.0
    %864 = vmatpush1.msra.mxu0 0.0
    %865 = vmatprep.subr.mxu0 0.0
    %866 = vmatpush1.msra.mxu0 0.0
    %867 = vmatprep.subr.mxu0 0.0
    %868 = vmatpush1.msra.mxu0 0.0
    %869 = vmatprep.subr.mxu0 0.0
    %870 = vmatpush1.msra.mxu0 0.0
    %871 = vmatprep.subr.mxu0 0.0
    %872 = vmatpush1.msra.mxu0 0.0
    %873 = vmatprep.subr.mxu0 0.0
    %874 = vmatpush1.msra.mxu0 0.0
    %875 = vmatprep.subr.mxu0 0.0
    %876 = vmatpush1.msra.mxu0 0.0
    %877 = vmatprep.subr.mxu0 0.0
    %878 = vmatpush1.msra.mxu0 0.0
    %879 = vmatprep.subr.mxu0 0.0
    %880 = vmatpush1.msra.mxu0 0.0
    %881 = vmatprep.subr.mxu0 0.0
    %882 = vmatpush1.msra.mxu0 0.0
    %883 = vmatprep.subr.mxu0 0.0
    %884 = vmatpush1.msra.mxu0 0.0
    %885 = vmatprep.subr.mxu0 0.0
    %886 = vmatpush1.msra.mxu0 0.0
    %887 = vmatprep.subr.mxu0 0.0
    %888 = vmatpush1.msra.mxu0 0.0
    %889 = vmatprep.subr.mxu0 0.0
    %890 = vmatpush1.msra.mxu0 0.0
    %891 = vmatprep.mubr.f32.mxu0 0.0
    %892 = vmatmul.mubr.f32.gmra.mrb[0].mxu0 %v825
    %v893 = vpop.f32.mrb[0].mxu0
    %v894 = vadd.f32 0.0, %v893
    %v895 = vpop.f32.mrb[0].mxu0
    %896 = vdwg.mxu0
    %v898 = vrot.slane %v894, 4
    %v900 = vadd.f32 %v179, %v898
    %v901 = vxor.u32 %v900, 2147483648
    %v902 = vmul.f32 %v901, 1.442695
    %v903 = vpow.pop %v902
    %v904 = vadd.f32 %v903, 1.0
    %v905 = vrcp.pop %v904
    %v906 = vmul.f32 1.0, %v905
    %v907 = vtanh.pop %v900
    %v909 = vrot.slane %v814, 6
    %v911 = vmul.f32 %v906, %v909
    %913 = vrot.lane.b32.xlu0 %v907, 64
    %v914 = vpop.permute.xlu0 %913
    %v916 = vmul.f32 %v906, %v914
    %918 = vrot.lane.b32.xlu0 %v916, 32
    %v919 = vpop.permute.xlu0 %918
    %v921 = vadd.f32 %v911, %v919
    %v922 = vtanh.pop %v921
    %924 = vrot.lane.b32.xlu0 %v922, 64
    %v925 = vpop.permute.xlu0 %924
    %v927 = vmul.f32 %v906, %v925
    %v929 = vrot.slane %v927, 4
    %930 = vrot.lane.b32.xlu0 %v929, 32
    %v931 = vpop.permute.xlu0 %930
    %v932 = vsel %vm188, %v931, 0
    %934 = vmatprep.subr.mxu0 0.0
    %935 = vmatpush1.msra.mxu0 %v182
    %936 = vmatprep.subr.mxu0 0.0
    %937 = vmatpush1.msra.mxu0 %v183
    %938 = vmatprep.subr.mxu0 0.0
    %939 = vmatpush1.msra.mxu0 %v184
    %940 = vmatprep.subr.mxu0 0.0
    %941 = vmatpush1.msra.mxu0 %v185
    %942 = vmatprep.subr.mxu0 0.0
    %943 = vmatpush1.msra.mxu0 0.0
    %944 = vmatprep.subr.mxu0 0.0
    %945 = vmatpush1.msra.mxu0 0.0
    %946 = vmatprep.subr.mxu0 0.0
    %947 = vmatpush1.msra.mxu0 0.0
    %948 = vmatprep.subr.mxu0 0.0
    %949 = vmatpush1.msra.mxu0 0.0
    %950 = vmatprep.subr.mxu0 0.0
    %951 = vmatpush1.msra.mxu0 0.0
    %952 = vmatprep.subr.mxu0 0.0
    %953 = vmatpush1.msra.mxu0 0.0
    %954 = vmatprep.subr.mxu0 0.0
    %955 = vmatpush1.msra.mxu0 0.0
    %956 = vmatprep.subr.mxu0 0.0
    %957 = vmatpush1.msra.mxu0 0.0
    %958 = vmatprep.subr.mxu0 0.0
    %959 = vmatpush1.msra.mxu0 0.0
    %960 = vmatprep.subr.mxu0 0.0
    %961 = vmatpush1.msra.mxu0 0.0
    %962 = vmatprep.subr.mxu0 0.0
    %963 = vmatpush1.msra.mxu0 0.0
    %964 = vmatprep.subr.mxu0 0.0
    %965 = vmatpush1.msra.mxu0 0.0
    %966 = vmatprep.subr.mxu0 0.0
    %967 = vmatpush1.msra.mxu0 0.0
    %968 = vmatprep.subr.mxu0 0.0
    %969 = vmatpush1.msra.mxu0 0.0
    %970 = vmatprep.subr.mxu0 0.0
    %971 = vmatpush1.msra.mxu0 0.0
    %972 = vmatprep.subr.mxu0 0.0
    %973 = vmatpush1.msra.mxu0 0.0
    %974 = vmatprep.subr.mxu0 0.0
    %975 = vmatpush1.msra.mxu0 0.0
    %976 = vmatprep.subr.mxu0 0.0
    %977 = vmatpush1.msra.mxu0 0.0
    %978 = vmatprep.subr.mxu0 0.0
    %979 = vmatpush1.msra.mxu0 0.0
    %980 = vmatprep.subr.mxu0 0.0
    %981 = vmatpush1.msra.mxu0 0.0
    %982 = vmatprep.subr.mxu0 0.0
    %983 = vmatpush1.msra.mxu0 0.0
    %984 = vmatprep.subr.mxu0 0.0
    %985 = vmatpush1.msra.mxu0 0.0
    %986 = vmatprep.subr.mxu0 0.0
    %987 = vmatpush1.msra.mxu0 0.0
    %988 = vmatprep.subr.mxu0 0.0
    %989 = vmatpush1.msra.mxu0 0.0
    %990 = vmatprep.subr.mxu0 0.0
    %991 = vmatpush1.msra.mxu0 0.0
    %992 = vmatprep.subr.mxu0 0.0
    %993 = vmatpush1.msra.mxu0 0.0
    %994 = vmatprep.subr.mxu0 0.0
    %995 = vmatpush1.msra.mxu0 0.0
    %996 = vmatprep.subr.mxu0 0.0
    %997 = vmatpush1.msra.mxu0 0.0
    %998 = vmatprep.mubr.f32.mxu0 0.0
    %999 = vmatmul.mubr.f32.gmra.mrb[0].mxu0 %v932
    %v1000 = vpop.f32.mrb[0].mxu0
    %v1001 = vadd.f32 0.0, %v1000
    %v1002 = vpop.f32.mrb[0].mxu0
    %1003 = vdwg.mxu0
    %v1005 = vrot.slane %v1001, 2
    %v1007 = vadd.f32 %v179, %v1005
    %v1008 = vxor.u32 %v1007, 2147483648
    %v1009 = vmul.f32 %v1008, 1.442695
    %v1010 = vpow.pop %v1009
    %v1011 = vadd.f32 %v1010, 1.0
    %v1012 = vrcp.pop %v1011
    %v1013 = vmul.f32 1.0, %v1012
    %v1014 = vtanh.pop %v1007
    %v1016 = vrot.slane %v921, 6
    %v1018 = vmul.f32 %v1013, %v1016
    %1020 = vrot.lane.b32.xlu0 %v1014, 64
    %v1021 = vpop.permute.xlu0 %1020
    %v1023 = vmul.f32 %v1013, %v1021
    %1025 = vrot.lane.b32.xlu0 %v1023, 32
    %v1026 = vpop.permute.xlu0 %1025
    %v1028 = vadd.f32 %v1018, %v1026
    %v1029 = vtanh.pop %v1028
    %1031 = vrot.lane.b32.xlu0 %v1029, 64
    %v1032 = vpop.permute.xlu0 %1031
    %v1034 = vmul.f32 %v1013, %v1032
    %1036 = vrot.lane.b32.xlu0 %v1034, 32
    %v1037 = vpop.permute.xlu0 %1036
    %vm1039 = vcmask 261126
    %1040 = vst.msk [vmem:[#allocation11 - $0x6] sm:$0xc0] %vm1039, %v1037
    %1042 = vrot.lane.b32.xlu0 %v1028, 96
    %v1043 = vpop.permute.xlu0 %1042
    %1045 = vst.msk [vmem:[#allocation13 - $0x6] sm:$0xc0] %vm1039, %v1043
    %vm1046 = vcmask 1041408
    %v1047 = vsel %vm1046, %v290, %v396
    %vm1048 = vcmask 1043456
    %v1049 = vsel %vm1048, %v1047, %v503
    %vm1050 = vcmask 1045504
    %v1051 = vsel %vm1050, %v1049, %v610
    %v1052 = vsel %vm1046, %v714, %v820
    %v1053 = vsel %vm1048, %v1052, %v927
    %v1054 = vsel %vm1050, %v1053, %v1034
    %v1055 = vld [vmem:[#allocation8] sm:$0xff]
    %v1056 = vld [vmem:[#allocation8 + $0x8] sm:$0xff]
    %v1057 = vld [vmem:[#allocation8 + $0x10] sm:$0xff]
    %v1058 = vld [vmem:[#allocation8 + $0x18] sm:$0xff]
    %v1059 = vld [vmem:[#allocation8 + $0x20] sm:$0xff]
    %v1060 = vld [vmem:[#allocation8 + $0x28] sm:$0xff]
    %v1061 = vld [vmem:[#allocation8 + $0x30] sm:$0xff]
    %v1062 = vld [vmem:[#allocation8 + $0x38] sm:$0xff]
    %v1063 = vld [vmem:[#allocation8 + $0x40] sm:$0xff]
    %v1064 = vld [vmem:[#allocation8 + $0x48] sm:$0xff]
    %v1065 = vld [vmem:[#allocation8 + $0x50] sm:$0xff]
    %v1066 = vld [vmem:[#allocation8 + $0x58] sm:$0xff]
    %v1067 = vld [vmem:[%s7] sm:$0x7]
    %v1069 = vlaneseq
    %v1070 = vshrl.u32 %v1069, 7
    %v1071 = vsub.s32 0, %v1070
    %v1072 = vrot.slane %v1067, %v1071
    %v1073 = vlaneseq
    %v1074 = vshrl.u32 %v1073, 7
    %v1075 = vsub.s32 1, %v1074
    %v1076 = vrot.slane %v1067, %v1075
    %v1077 = vlaneseq
    %v1078 = vshrl.u32 %v1077, 7
    %v1079 = vsub.s32 2, %v1078
    %v1080 = vrot.slane %v1067, %v1079
    %1086 = vrot.lane.b32.xlu0 %v1051, 32
    %v1087 = vpop.permute.xlu0 %1086
    %1088 = vrot.lane.b32.xlu0 %v1054, 32
    %v1089 = vpop.permute.xlu0 %1088
    %v1090 = vsel %vm188, %v1087, 0
    %v1092 = vsel %vm188, %v1089, 0
    %1094 = vmatprep.subr.mxu0 %v1056
    %1095 = vmatpush1.msra.mxu0 %v1055
    %1096 = vmatprep.subr.mxu0 %v1059
    %1097 = vmatpush1.msra.mxu0 %v1058
    %1098 = vmatprep.subr.mxu0 %v1062
    %1099 = vmatpush1.msra.mxu0 %v1061
    %1100 = vmatprep.subr.mxu0 %v1065
    %1101 = vmatpush1.msra.mxu0 %v1064
    %1102 = vmatprep.subr.mxu0 0.0
    %1103 = vmatpush1.msra.mxu0 0.0
    %1104 = vmatprep.subr.mxu0 0.0
    %1105 = vmatpush1.msra.mxu0 0.0
    %1106 = vmatprep.subr.mxu0 0.0
    %1107 = vmatpush1.msra.mxu0 0.0
    %1108 = vmatprep.subr.mxu0 0.0
    %1109 = vmatpush1.msra.mxu0 0.0
    %1110 = vmatprep.subr.mxu0 0.0
    %1111 = vmatpush1.msra.mxu0 0.0
    %1112 = vmatprep.subr.mxu0 0.0
    %1113 = vmatpush1.msra.mxu0 0.0
    %1114 = vmatprep.subr.mxu0 0.0
    %1115 = vmatpush1.msra.mxu0 0.0
    %1116 = vmatprep.subr.mxu0 0.0
    %1117 = vmatpush1.msra.mxu0 0.0
    %1118 = vmatprep.subr.mxu0 0.0
    %1119 = vmatpush1.msra.mxu0 0.0
    %1120 = vmatprep.subr.mxu0 0.0
    %1121 = vmatpush1.msra.mxu0 0.0
    %1122 = vmatprep.subr.mxu0 0.0
    %1123 = vmatpush1.msra.mxu0 0.0
    %1124 = vmatprep.subr.mxu0 0.0
    %1125 = vmatpush1.msra.mxu0 0.0
    %1126 = vmatprep.subr.mxu0 0.0
    %1127 = vmatpush1.msra.mxu0 0.0
    %1128 = vmatprep.subr.mxu0 0.0
    %1129 = vmatpush1.msra.mxu0 0.0
    %1130 = vmatprep.subr.mxu0 0.0
    %1131 = vmatpush1.msra.mxu0 0.0
    %1132 = vmatprep.subr.mxu0 0.0
    %1133 = vmatpush1.msra.mxu0 0.0
    %1134 = vmatprep.subr.mxu0 0.0
    %1135 = vmatpush1.msra.mxu0 0.0
    %1136 = vmatprep.subr.mxu0 0.0
    %1137 = vmatpush1.msra.mxu0 0.0
    %1138 = vmatprep.subr.mxu0 0.0
    %1139 = vmatpush1.msra.mxu0 0.0
    %1140 = vmatprep.subr.mxu0 0.0
    %1141 = vmatpush1.msra.mxu0 0.0
    %1142 = vmatprep.subr.mxu0 0.0
    %1143 = vmatpush1.msra.mxu0 0.0
    %1144 = vmatprep.subr.mxu0 0.0
    %1145 = vmatpush1.msra.mxu0 0.0
    %1146 = vmatprep.subr.mxu0 0.0
    %1147 = vmatpush1.msra.mxu0 0.0
    %1148 = vmatprep.subr.mxu0 0.0
    %1149 = vmatpush1.msra.mxu0 0.0
    %1150 = vmatprep.subr.mxu0 0.0
    %1151 = vmatpush1.msra.mxu0 0.0
    %1152 = vmatprep.subr.mxu0 0.0
    %1153 = vmatpush1.msra.mxu0 0.0
    %1154 = vmatprep.subr.mxu0 0.0
    %1155 = vmatpush1.msra.mxu0 0.0
    %1156 = vmatprep.subr.mxu0 0.0
    %1157 = vmatpush1.msra.mxu0 0.0
    %1158 = vmatprep.mubr.f32.mxu0 0.0
    %1159 = vmatmul.mubr.f32.gmra.mrb[0].mxu0 %v1090
    %v1160 = vpop.f32.mrb[0].mxu0
    %v1161 = vadd.f32 %v1072, %v1160
    %v1162 = vpop.f32.mrb[0].mxu0
    %v1163 = vadd.f32 %v1076, %v1162
    %1164 = vmatprep.mubr.f32.mxu0 0.0
    %1165 = vmatmul.mubr.f32.gmra.mrb[0].mxu0 %v1092
    %v1166 = vpop.f32.mrb[0].mxu0
    %v1167 = vadd.f32 %v1072, %v1166
    %v1168 = vpop.f32.mrb[0].mxu0
    %v1169 = vadd.f32 %v1076, %v1168
    %1170 = vdwg.mxu0
    %1171 = vmatprep.subr.mxu0 0.0
    %1172 = vmatpush1.msra.mxu0 %v1057
    %1173 = vmatprep.subr.mxu0 0.0
    %1174 = vmatpush1.msra.mxu0 %v1060
    %1175 = vmatprep.subr.mxu0 0.0
    %1176 = vmatpush1.msra.mxu0 %v1063
    %1177 = vmatprep.subr.mxu0 0.0
    %1178 = vmatpush1.msra.mxu0 %v1066
    %1179 = vmatprep.subr.mxu0 0.0
    %1180 = vmatpush1.msra.mxu0 0.0
    %1181 = vmatprep.subr.mxu0 0.0
    %1182 = vmatpush1.msra.mxu0 0.0
    %1183 = vmatprep.subr.mxu0 0.0
    %1184 = vmatpush1.msra.mxu0 0.0
    %1185 = vmatprep.subr.mxu0 0.0
    %1186 = vmatpush1.msra.mxu0 0.0
    %1187 = vmatprep.subr.mxu0 0.0
    %1188 = vmatpush1.msra.mxu0 0.0
    %1189 = vmatprep.subr.mxu0 0.0
    %1190 = vmatpush1.msra.mxu0 0.0
    %1191 = vmatprep.subr.mxu0 0.0
    %1192 = vmatpush1.msra.mxu0 0.0
    %1193 = vmatprep.subr.mxu0 0.0
    %1194 = vmatpush1.msra.mxu0 0.0
    %1195 = vmatprep.subr.mxu0 0.0
    %1196 = vmatpush1.msra.mxu0 0.0
    %1197 = vmatprep.subr.mxu0 0.0
    %1198 = vmatpush1.msra.mxu0 0.0
    %1199 = vmatprep.subr.mxu0 0.0
    %1200 = vmatpush1.msra.mxu0 0.0
    %1201 = vmatprep.subr.mxu0 0.0
    %1202 = vmatpush1.msra.mxu0 0.0
    %1203 = vmatprep.subr.mxu0 0.0
    %1204 = vmatpush1.msra.mxu0 0.0
    %1205 = vmatprep.subr.mxu0 0.0
    %1206 = vmatpush1.msra.mxu0 0.0
    %1207 = vmatprep.subr.mxu0 0.0
    %1208 = vmatpush1.msra.mxu0 0.0
    %1209 = vmatprep.subr.mxu0 0.0
    %1210 = vmatpush1.msra.mxu0 0.0
    %1211 = vmatprep.subr.mxu0 0.0
    %1212 = vmatpush1.msra.mxu0 0.0
    %1213 = vmatprep.subr.mxu0 0.0
    %1214 = vmatpush1.msra.mxu0 0.0
    %1215 = vmatprep.subr.mxu0 0.0
    %1216 = vmatpush1.msra.mxu0 0.0
    %1217 = vmatprep.subr.mxu0 0.0
    %1218 = vmatpush1.msra.mxu0 0.0
    %1219 = vmatprep.subr.mxu0 0.0
    %1220 = vmatpush1.msra.mxu0 0.0
    %1221 = vmatprep.subr.mxu0 0.0
    %1222 = vmatpush1.msra.mxu0 0.0
    %1223 = vmatprep.subr.mxu0 0.0
    %1224 = vmatpush1.msra.mxu0 0.0
    %1225 = vmatprep.subr.mxu0 0.0
    %1226 = vmatpush1.msra.mxu0 0.0
    %1227 = vmatprep.subr.mxu0 0.0
    %1228 = vmatpush1.msra.mxu0 0.0
    %1229 = vmatprep.subr.mxu0 0.0
    %1230 = vmatpush1.msra.mxu0 0.0
    %1231 = vmatprep.subr.mxu0 0.0
    %1232 = vmatpush1.msra.mxu0 0.0
    %1233 = vmatprep.subr.mxu0 0.0
    %1234 = vmatpush1.msra.mxu0 0.0
    %1235 = vmatprep.mubr.f32.mxu0 0.0
    %1236 = vmatmul.mubr.f32.gmra.mrb[0].mxu0 %v1090
    %v1237 = vpop.f32.mrb[0].mxu0
    %v1238 = vadd.f32 %v1080, %v1237
    %v1239 = vpop.f32.mrb[0].mxu0
    %1240 = vmatprep.mubr.f32.mxu0 0.0
    %1241 = vmatmul.mubr.f32.gmra.mrb[0].mxu0 %v1092
    %v1242 = vpop.f32.mrb[0].mxu0
    %v1243 = vadd.f32 %v1080, %v1242
    %v1244 = vpop.f32.mrb[0].mxu0
    %1245 = vdwg.mxu0
    %1246 = vst [vmem:[#allocation10] sm:$0xff] %v1161
    %1247 = vst [vmem:[#allocation10 + $0x8] sm:$0xff] %v1163
    %1248 = vst [vmem:[#allocation10 + $0x18] sm:$0xff] %v1167
    %1249 = vst [vmem:[#allocation10 + $0x20] sm:$0xff] %v1169
    %v1250 = vmul.f32 %v1238, 1.442695
    %v1251 = vpow.pop %v1250
    %v1252 = vmul.f32 %v1243, 1.442695
    %v1253 = vpow.pop %v1252
    %1254 = vst [vmem:[#allocation10 + $0x10] sm:$0xff] %v1251
    %1255 = vst [vmem:[#allocation10 + $0x28] sm:$0xff] %v1253
    // Predicated region
    $region50: #{tpu_custom_call.1} parent=1 // pred_check
      _
    $region51: #{tpu_custom_call.1} parent=1 // pred_check_branch
      %1257 = sbr.rel (0) target = $region53
    $region52: #{tpu_custom_call.1} parent=1 // pred_region
      %s1259 = ssub.s32 768, 768
      %1260 = vsyncadd [#allocation4], %s1259
      %s1261 = sshll.u32 [#allocation10], 4
      %s1262 = int_to_ptr.vmem [resolvable:$true] %s1261
      %1267 = dma.vmem_to_hbm [thread:$0]  %s1262, 768, %s8, [#allocation4], 384, 384, 24
    $region53: #{tpu_custom_call.1} parent=1 // pred_fallthru
      _
    // Predicated region
    $region54: #{tpu_custom_call.1} parent=1 // pred_check
      _
    $region55: #{tpu_custom_call.1} parent=1 // pred_check_branch
      %1269 = sbr.rel (0) target = $region57
    $region56: #{tpu_custom_call.1} parent=1 // pred_region
      %s1271 = ssub.s32 32, 32
      %1272 = vsyncadd [#allocation12], %s1271
      %s1274 = sshll.u32 [#allocation11], 4
      %s1275 = int_to_ptr.vmem [resolvable:$true] %s1274
      %1277 = dma.vmem_to_hbm [thread:$0]  %s1275, 32, %s9, [#allocation12]
    $region57: #{tpu_custom_call.1} parent=1 // pred_fallthru
      _
    // Predicated region
    $region58: #{tpu_custom_call.1} parent=1 // pred_check
      _
    $region59: #{tpu_custom_call.1} parent=1 // pred_check_branch
      %1279 = sbr.rel (0) target = $region61
    $region60: #{tpu_custom_call.1} parent=1 // pred_region
      %s1281 = ssub.s32 32, 32
      %1282 = vsyncadd [#allocation12], %s1281
      %s1284 = sshll.u32 [#allocation13], 4
      %s1285 = int_to_ptr.vmem [resolvable:$true] %s1284
      %1287 = dma.vmem_to_hbm [thread:$0]  %s1285, 32, %s10, [#allocation12]
    $region61: #{tpu_custom_call.1} parent=1 // pred_fallthru
      _
    // Predicated region
    $region62: #{tpu_custom_call.1} parent=1 // pred_check
      _
    $region63: #{tpu_custom_call.1} parent=1 // pred_check_branch
      %1289 = sbr.rel (0) target = $region65
    $region64: #{tpu_custom_call.1} parent=1 // pred_region
      %1290 = dma.done [#allocation4], 768
    $region65: #{tpu_custom_call.1} parent=1 // pred_fallthru
      _
    // Predicated region
    $region66: #{tpu_custom_call.1} parent=1 // pred_check
      _
    $region67: #{tpu_custom_call.1} parent=1 // pred_check_branch
      %1292 = sbr.rel (0) target = $region69
    $region68: #{tpu_custom_call.1} parent=1 // pred_region
      %1293 = dma.done [#allocation12], 32
    $region69: #{tpu_custom_call.1} parent=1 // pred_fallthru
      _
    // Predicated region
    $region70: #{tpu_custom_call.1} parent=1 // pred_check
      _
    $region71: #{tpu_custom_call.1} parent=1 // pred_check_branch
      %1295 = sbr.rel (0) target = $region73
    $region72: #{tpu_custom_call.1} parent=1 // pred_region
      %1296 = dma.done [#allocation12], 32
    $region73: #{tpu_custom_call.1} parent=1 // pred_fallthru
      _
    %1297 = vsyncpa [#allocation3], 1
    %1298 = vsyncpa [#allocation6], 1
    %1299 = vsyncpa [#allocation9], 1
    %1300 = vsyncpa [#allocation4], 1
    %1301 = vsyncpa [#allocation12], 1

</llo_original>
